<compile_context>
chip_gen: v7x
topology: tpu7x:2x2x1
jax: 0.10.0
libtpu: 0.0.40
codegen_flags: <defaults>
</compile_context>

<pallas_src>
import math

import jax
import jax.numpy as jnp
from jax import lax
from jax.experimental import pallas as pl
from jax.experimental.pallas import tpu as pltpu


def _mdlstm_kernel(x_ref, w_ih_ref, bias_ref, w_hh_t_ref, out_ref):
    """Recurrent hot path.

    x_ref      : (Bpad, T)    f32   input pixels (batch along sublanes)
    w_ih_ref   : (1, 4H)      f32   input-projection row (input_size == 1)
    bias_ref   : (1, 4H)      f32   bias_ih + bias_hh
    w_hh_t_ref : (H, 4H)      bf16  recurrent weight (transposed)
    out_ref    : (Bpad, T*H)  f32   lane-dense output, torch.cat layout
    """
    B, T = x_ref.shape
    G = w_hh_t_ref.shape[1]             # G == 4 * H
    H = G // 4

    # Loaded once; reused by every (statically unrolled) step.
    w_hh_t = w_hh_t_ref[...]            # (H, 4H) bf16
    w_ih_row = w_ih_ref[...]            # (1, 4H) f32
    bias = bias_ref[...]                # (1, 4H) f32

    # Per-lane constants for the fused nonlinearity, hoisted out of the loop:
    #   sigmoid(x) = 0.5 * tanh(0.5 * x) + 0.5   on the i/f/o lane blocks
    #   tanh(x)                                  on the g lane block
    lane = lax.broadcasted_iota(jnp.int32, (B, G), dimension=1)
    is_g = (lane >= 2 * H) & (lane < 3 * H)
    scale = jnp.where(is_g, 1.0, 0.5).astype(jnp.float32)
    offset = jnp.where(is_g, 0.0, 0.5).astype(jnp.float32)

    h = jnp.zeros((B, H), jnp.float32)
    c = jnp.zeros((B, H), jnp.float32)

    # T is small and static: a plain Python loop gives compile-time-constant
    # offsets for the x slice and the lane-dense output stores, and lets the
    # scheduler overlap MXU / EUP / VPU work across steps.
    for t in range(T):
        # Input projection + biases: independent of h, so it overlaps the
        # recurrent matmul latency of this step.
        gates_in = x_ref[:, t:t + 1] * w_ih_row + bias               # (B, 4H)

        # Recurrent projection on the MXU: bf16 operands, f32 accumulation.
        hidden = jnp.dot(h.astype(jnp.bfloat16), w_hh_t,
                         preferred_element_type=jnp.float32)         # (B, 4H)
        gates = gates_in + hidden                                    # (B, 4H)

        # One full-width EUP tanh instead of four quarter-lane nonlinearities.
        act = scale * jnp.tanh(scale * gates) + offset               # (B, 4H)
        ingate = act[:, 0:H]
        forgetgate = act[:, H:2 * H]
        cellgate = act[:, 2 * H:3 * H]
        outgate = act[:, 3 * H:4 * H]

        # Row 0: c == 0, so the forget term vanishes -- matches the PyTorch
        # branch that skips it on the first row.
        c = forgetgate * c + ingate * cellgate
        h = outgate * jnp.tanh(c)

        # Lane-dense store at a static lane offset (torch.cat(h_matrix, 1)).
        out_ref[:, t * H:(t + 1) * H] = h


def mdlstm_forward(x, weight_ih, weight_hh, bias_ih, bias_hh):
    """x: (B, T) float32; returns (B, T*H) like torch.cat(h_matrix, 1)."""
    B, T = x.shape
    H = weight_hh.shape[1]
    # The module defines weight_ih as (4H, 1): input_size == 1 is inherent.
    assert weight_ih.shape == (4 * H, 1), weight_ih.shape

    B_pad = ((B + 7) // 8) * 8          # full sublane occupancy for (B, 4H) vregs

    x_bt = x.astype(jnp.float32)
    if B_pad != B:
        # Padded batch rows B..B_pad compute garbage h/c (gates = bias only);
        # harmless — they are sliced off below and all inputs stay finite.
        x_bt = jnp.pad(x_bt, ((0, B_pad - B), (0, 0)))               # (Bpad, T)

    w_ih_row = weight_ih.reshape(1, 4 * H).astype(jnp.float32)       # (1, 4H)
    bias = (bias_ih + bias_hh).reshape(1, 4 * H).astype(jnp.float32)
    # bf16 recurrent weight -> single MXU pass per step (f32 accumulation).
    w_hh_t = jnp.transpose(weight_hh).astype(jnp.bfloat16)           # (H, 4H)

    out = pl.pallas_call(
        _mdlstm_kernel,
        out_shape=jax.ShapeDtypeStruct((B_pad, T * H), jnp.float32),
        in_specs=[
            pl.BlockSpec(memory_space=pltpu.MemorySpace.VMEM),
            pl.BlockSpec(memory_space=pltpu.MemorySpace.VMEM),
            pl.BlockSpec(memory_space=pltpu.MemorySpace.VMEM),
            pl.BlockSpec(memory_space=pltpu.MemorySpace.VMEM),
        ],
        out_specs=pl.BlockSpec(memory_space=pltpu.MemorySpace.VMEM),
    )(x_bt, w_ih_row, bias, w_hh_t)

    # Output is already in torch.cat(h_matrix, 1) layout; just drop padding.
    return out[:B]


def mdlstm_reference(x, weight_ih, weight_hh, bias_ih, bias_hh, *, emulate_bf16=False):
    """Pure-JAX re-implementation of the PyTorch forward (intended semantics).

    emulate_bf16=True rounds the recurrent-matmul operands to bf16 (matching
    the kernel's MXU path) while keeping float32 accumulation.
    """
    B, T = x.shape
    H = weight_hh.shape[1]
    w_hh_t = jnp.transpose(weight_hh).astype(jnp.float32)            # (H, 4H)
    if emulate_bf16:
        w_hh_t = w_hh_t.astype(jnp.bfloat16).astype(jnp.float32)
    h = jnp.zeros((B, H), jnp.float32)
    c = jnp.zeros((B, H), jnp.float32)
    outs = []
    for t in range(T):
        pixels = x[:, t:t + 1]                                       # (B, 1)
        h_in = h.astype(jnp.bfloat16).astype(jnp.float32) if emulate_bf16 else h
        hidden = jnp.dot(h_in, w_hh_t,
                         precision=lax.Precision.HIGHEST) + bias_hh
        gates = jnp.dot(pixels, weight_ih.T,
                        precision=lax.Precision.HIGHEST) + bias_ih + hidden
        i, f, g, o = jnp.split(gates, 4, axis=1)
        i = jax.nn.sigmoid(i)
        f = jax.nn.sigmoid(f)
        g = jnp.tanh(g)
        o = jax.nn.sigmoid(o)
        c = (f * c if t > 0 else 0.0) + i * g
        h = o * jnp.tanh(c)
        outs.append(h)
    return jnp.concatenate(outs, axis=1)


if __name__ == "__main__":
    # Module config: input_size=1 (scalar pixel per step), hidden_size=32,
    # img_dim=16.  Input is (batch, seq) = (4, 16).
    input_size = 1
    hidden_size = 32
    img_dim = 16
    B, T, H = 4, img_dim, hidden_size

    key = jax.random.PRNGKey(0)
    k_x, k_wih, k_whh, k_bih, k_bhh = jax.random.split(key, 5)

    stdv = 1.0 / math.sqrt(hidden_size)
    weight_ih = jax.random.uniform(k_wih, (4 * H, 1), jnp.float32, -stdv, stdv)
    weight_hh = jax.random.uniform(k_whh, (4 * H, H), jnp.float32, -stdv, stdv)
    bias_ih = jax.random.uniform(k_bih, (4 * H,), jnp.float32, -stdv, stdv)
    bias_hh = jax.random.uniform(k_bhh, (4 * H,), jnp.float32, -stdv, stdv)

    x = jax.random.normal(k_x, (B, T), jnp.float32)

    mdlstm_fn = jax.jit(mdlstm_forward)
    out = mdlstm_fn(x, weight_ih, weight_hh, bias_ih, bias_hh)
    out = jax.block_until_ready(out)
    assert out.shape == (B, T * H), out.shape

    # Tight check vs a reference that emulates the kernel's bf16 recurrent matmul.
    ref_bf16 = mdlstm_reference(x, weight_ih, weight_hh, bias_ih, bias_hh,
                                emulate_bf16=True)
    assert jnp.allclose(out, ref_bf16, atol=2e-3, rtol=2e-3), \
        float(jnp.max(jnp.abs(out - ref_bf16)))

    # Looser check vs the exact f32 reference (bf16 recurrent weights shift
    # values by O(1e-3) through the 16 recurrent steps).
    ref_f32 = mdlstm_reference(x, weight_ih, weight_hh, bias_ih, bias_hh,
                               emulate_bf16=False)
    assert jnp.allclose(out, ref_f32, atol=2e-2, rtol=2e-2), \
        float(jnp.max(jnp.abs(out - ref_f32)))

    print("KERNEL_OK")
</pallas_src>

<mosaic_0001>
module attributes {stable_mosaic.version = 11 : i64} {
  func.func @_mdlstm_kernel(%arg0: memref<8x16xf32, #tpu.memory_space<vmem>>, %arg1: memref<1x128xf32, #tpu.memory_space<vmem>>, %arg2: memref<1x128xf32, #tpu.memory_space<vmem>>, %arg3: memref<32x128xbf16, #tpu.memory_space<vmem>>, %arg4: memref<8x512xf32, #tpu.memory_space<vmem>>) attributes {dimension_semantics = [], scalar_prefetch = 0 : i64, scratch_operands = 0 : i64, tpu.core_type = #tpu.core_type<tc>} {
    %c0 = arith.constant 0 : index
    %c0_0 = arith.constant 0 : index
    %0 = vector.load %arg3[%c0, %c0_0] : memref<32x128xbf16, #tpu.memory_space<vmem>>, vector<32x128xbf16>
    %c0_1 = arith.constant 0 : index
    %c0_2 = arith.constant 0 : index
    %1 = vector.load %arg1[%c0_1, %c0_2] : memref<1x128xf32, #tpu.memory_space<vmem>>, vector<1x128xf32>
    %c0_3 = arith.constant 0 : index
    %c0_4 = arith.constant 0 : index
    %2 = vector.load %arg2[%c0_3, %c0_4] : memref<1x128xf32, #tpu.memory_space<vmem>>, vector<1x128xf32>
    %3 = tpu.iota {dimensions = array<i32: 1>} : vector<8x128xi32>
    %c64_i32 = arith.constant 64 : i32
    %4 = vector.broadcast %c64_i32 : i32 to vector<8x128xi32>
    %5 = arith.cmpi sge, %3, %4 : vector<8x128xi32>
    %c96_i32 = arith.constant 96 : i32
    %6 = vector.broadcast %c96_i32 : i32 to vector<8x128xi32>
    %7 = arith.cmpi slt, %3, %6 : vector<8x128xi32>
    %8 = arith.andi %5, %7 : vector<8x128xi1>
    %cst = arith.constant 1.000000e+00 : f32
    %cst_5 = arith.constant 5.000000e-01 : f32
    %9 = vector.broadcast %cst : f32 to vector<8x128xf32>
    %10 = vector.broadcast %cst_5 : f32 to vector<8x128xf32>
    %11 = arith.select %8, %9, %10 : vector<8x128xi1>, vector<8x128xf32>
    %cst_6 = arith.constant 0.000000e+00 : f32
    %cst_7 = arith.constant 5.000000e-01 : f32
    %12 = vector.broadcast %cst_6 : f32 to vector<8x128xf32>
    %13 = vector.broadcast %cst_7 : f32 to vector<8x128xf32>
    %14 = arith.select %8, %12, %13 : vector<8x128xi1>, vector<8x128xf32>
    %cst_8 = arith.constant 0.000000e+00 : f32
    %15 = vector.broadcast %cst_8 : f32 to vector<8x32xf32>
    %cst_9 = arith.constant 0.000000e+00 : f32
    %16 = vector.broadcast %cst_9 : f32 to vector<8x32xf32>
    %c0_10 = arith.constant 0 : index
    %c0_11 = arith.constant 0 : index
    %17 = vector.load %arg0[%c0_10, %c0_11] : memref<8x16xf32, #tpu.memory_space<vmem>>, vector<8x1xf32>
    %18 = vector.broadcast %17 : vector<8x1xf32> to vector<8x128xf32>
    %19 = vector.broadcast %1 : vector<1x128xf32> to vector<8x128xf32>
    %20 = arith.mulf %18, %19 : vector<8x128xf32>
    %21 = vector.broadcast %2 : vector<1x128xf32> to vector<8x128xf32>
    %22 = arith.addf %20, %21 : vector<8x128xf32>
    %23 = arith.truncf %15 : vector<8x32xf32> to vector<8x32xbf16>
    %cst_12 = arith.constant dense<0.000000e+00> : vector<8x128xf32>
    %24 = tpu.matmul %23, %0, %cst_12 {dimension_numbers = #tpu.dot_dimension_numbers<[1], [0], [0], [1], [0, 0, 1, 1], [], []>} : vector<8x32xbf16>, vector<32x128xbf16>, vector<8x128xf32> -> vector<8x128xf32>
    %25 = arith.addf %22, %24 : vector<8x128xf32>
    %26 = arith.mulf %11, %25 : vector<8x128xf32>
    %27 = math.tanh %26 : vector<8x128xf32>
    %28 = arith.mulf %11, %27 : vector<8x128xf32>
    %29 = arith.addf %28, %14 : vector<8x128xf32>
    %30 = vector.extract_strided_slice %29 {offsets = [0, 0], sizes = [8, 32], strides = [1, 1]} : vector<8x128xf32> to vector<8x32xf32>
    %31 = vector.extract_strided_slice %29 {offsets = [0, 32], sizes = [8, 32], strides = [1, 1]} : vector<8x128xf32> to vector<8x32xf32>
    %32 = vector.extract_strided_slice %29 {offsets = [0, 64], sizes = [8, 32], strides = [1, 1]} : vector<8x128xf32> to vector<8x32xf32>
    %33 = vector.extract_strided_slice %29 {offsets = [0, 96], sizes = [8, 32], strides = [1, 1]} : vector<8x128xf32> to vector<8x32xf32>
    %34 = arith.mulf %31, %16 : vector<8x32xf32>
    %35 = arith.mulf %30, %32 : vector<8x32xf32>
    %36 = arith.addf %34, %35 : vector<8x32xf32>
    %37 = math.tanh %36 : vector<8x32xf32>
    %38 = arith.mulf %33, %37 : vector<8x32xf32>
    %c0_13 = arith.constant 0 : index
    %c0_14 = arith.constant 0 : index
    %39 = vector.load %arg4[%c0_13, %c0_14] : memref<8x512xf32, #tpu.memory_space<vmem>>, vector<8x32xf32>
    tpu.vector_store %arg4[%c0_13, %c0_14], %38 {strides = array<i32>} : memref<8x512xf32, #tpu.memory_space<vmem>>, vector<8x32xf32>,
    %c0_15 = arith.constant 0 : index
    %c1 = arith.constant 1 : index
    %40 = vector.load %arg0[%c0_15, %c1] : memref<8x16xf32, #tpu.memory_space<vmem>>, vector<8x1xf32>
    %41 = vector.broadcast %40 : vector<8x1xf32> to vector<8x128xf32>
    %42 = vector.broadcast %1 : vector<1x128xf32> to vector<8x128xf32>
    %43 = arith.mulf %41, %42 : vector<8x128xf32>
    %44 = vector.broadcast %2 : vector<1x128xf32> to vector<8x128xf32>
    %45 = arith.addf %43, %44 : vector<8x128xf32>
    %46 = arith.truncf %38 : vector<8x32xf32> to vector<8x32xbf16>
    %cst_16 = arith.constant dense<0.000000e+00> : vector<8x128xf32>
    %47 = tpu.matmul %46, %0, %cst_16 {dimension_numbers = #tpu.dot_dimension_numbers<[1], [0], [0], [1], [0, 0, 1, 1], [], []>} : vector<8x32xbf16>, vector<32x128xbf16>, vector<8x128xf32> -> vector<8x128xf32>
    %48 = arith.addf %45, %47 : vector<8x128xf32>
    %49 = arith.mulf %11, %48 : vector<8x128xf32>
    %50 = math.tanh %49 : vector<8x128xf32>
    %51 = arith.mulf %11, %50 : vector<8x128xf32>
    %52 = arith.addf %51, %14 : vector<8x128xf32>
    %53 = vector.extract_strided_slice %52 {offsets = [0, 0], sizes = [8, 32], strides = [1, 1]} : vector<8x128xf32> to vector<8x32xf32>
    %54 = vector.extract_strided_slice %52 {offsets = [0, 32], sizes = [8, 32], strides = [1, 1]} : vector<8x128xf32> to vector<8x32xf32>
    %55 = vector.extract_strided_slice %52 {offsets = [0, 64], sizes = [8, 32], strides = [1, 1]} : vector<8x128xf32> to vector<8x32xf32>
    %56 = vector.extract_strided_slice %52 {offsets = [0, 96], sizes = [8, 32], strides = [1, 1]} : vector<8x128xf32> to vector<8x32xf32>
    %57 = arith.mulf %54, %36 : vector<8x32xf32>
    %58 = arith.mulf %53, %55 : vector<8x32xf32>
    %59 = arith.addf %57, %58 : vector<8x32xf32>
    %60 = math.tanh %59 : vector<8x32xf32>
    %61 = arith.mulf %56, %60 : vector<8x32xf32>
    %c0_17 = arith.constant 0 : index
    %c32 = arith.constant 32 : index
    %62 = vector.load %arg4[%c0_17, %c32] : memref<8x512xf32, #tpu.memory_space<vmem>>, vector<8x32xf32>
    tpu.vector_store %arg4[%c0_17, %c32], %61 {strides = array<i32>} : memref<8x512xf32, #tpu.memory_space<vmem>>, vector<8x32xf32>,
    %c0_18 = arith.constant 0 : index
    %c2 = arith.constant 2 : index
    %63 = vector.load %arg0[%c0_18, %c2] : memref<8x16xf32, #tpu.memory_space<vmem>>, vector<8x1xf32>
    %64 = vector.broadcast %63 : vector<8x1xf32> to vector<8x128xf32>
    %65 = vector.broadcast %1 : vector<1x128xf32> to vector<8x128xf32>
    %66 = arith.mulf %64, %65 : vector<8x128xf32>
    %67 = vector.broadcast %2 : vector<1x128xf32> to vector<8x128xf32>
    %68 = arith.addf %66, %67 : vector<8x128xf32>
    %69 = arith.truncf %61 : vector<8x32xf32> to vector<8x32xbf16>
    %cst_19 = arith.constant dense<0.000000e+00> : vector<8x128xf32>
    %70 = tpu.matmul %69, %0, %cst_19 {dimension_numbers = #tpu.dot_dimension_numbers<[1], [0], [0], [1], [0, 0, 1, 1], [], []>} : vector<8x32xbf16>, vector<32x128xbf16>, vector<8x128xf32> -> vector<8x128xf32>
    %71 = arith.addf %68, %70 : vector<8x128xf32>
    %72 = arith.mulf %11, %71 : vector<8x128xf32>
    %73 = math.tanh %72 : vector<8x128xf32>
    %74 = arith.mulf %11, %73 : vector<8x128xf32>
    %75 = arith.addf %74, %14 : vector<8x128xf32>
    %76 = vector.extract_strided_slice %75 {offsets = [0, 0], sizes = [8, 32], strides = [1, 1]} : vector<8x128xf32> to vector<8x32xf32>
    %77 = vector.extract_strided_slice %75 {offsets = [0, 32], sizes = [8, 32], strides = [1, 1]} : vector<8x128xf32> to vector<8x32xf32>
    %78 = vector.extract_strided_slice %75 {offsets = [0, 64], sizes = [8, 32], strides = [1, 1]} : vector<8x128xf32> to vector<8x32xf32>
    %79 = vector.extract_strided_slice %75 {offsets = [0, 96], sizes = [8, 32], strides = [1, 1]} : vector<8x128xf32> to vector<8x32xf32>
    %80 = arith.mulf %77, %59 : vector<8x32xf32>
    %81 = arith.mulf %76, %78 : vector<8x32xf32>
    %82 = arith.addf %80, %81 : vector<8x32xf32>
    %83 = math.tanh %82 : vector<8x32xf32>
    %84 = arith.mulf %79, %83 : vector<8x32xf32>
    %c0_20 = arith.constant 0 : index
    %c64 = arith.constant 64 : index
    %85 = vector.load %arg4[%c0_20, %c64] : memref<8x512xf32, #tpu.memory_space<vmem>>, vector<8x32xf32>
    tpu.vector_store %arg4[%c0_20, %c64], %84 {strides = array<i32>} : memref<8x512xf32, #tpu.memory_space<vmem>>, vector<8x32xf32>,
    %c0_21 = arith.constant 0 : index
    %c3 = arith.constant 3 : index
    %86 = vector.load %arg0[%c0_21, %c3] : memref<8x16xf32, #tpu.memory_space<vmem>>, vector<8x1xf32>
    %87 = vector.broadcast %86 : vector<8x1xf32> to vector<8x128xf32>
    %88 = vector.broadcast %1 : vector<1x128xf32> to vector<8x128xf32>
    %89 = arith.mulf %87, %88 : vector<8x128xf32>
    %90 = vector.broadcast %2 : vector<1x128xf32> to vector<8x128xf32>
    %91 = arith.addf %89, %90 : vector<8x128xf32>
    %92 = arith.truncf %84 : vector<8x32xf32> to vector<8x32xbf16>
    %cst_22 = arith.constant dense<0.000000e+00> : vector<8x128xf32>
    %93 = tpu.matmul %92, %0, %cst_22 {dimension_numbers = #tpu.dot_dimension_numbers<[1], [0], [0], [1], [0, 0, 1, 1], [], []>} : vector<8x32xbf16>, vector<32x128xbf16>, vector<8x128xf32> -> vector<8x128xf32>
    %94 = arith.addf %91, %93 : vector<8x128xf32>
    %95 = arith.mulf %11, %94 : vector<8x128xf32>
    %96 = math.tanh %95 : vector<8x128xf32>
    %97 = arith.mulf %11, %96 : vector<8x128xf32>
    %98 = arith.addf %97, %14 : vector<8x128xf32>
    %99 = vector.extract_strided_slice %98 {offsets = [0, 0], sizes = [8, 32], strides = [1, 1]} : vector<8x128xf32> to vector<8x32xf32>
    %100 = vector.extract_strided_slice %98 {offsets = [0, 32], sizes = [8, 32], strides = [1, 1]} : vector<8x128xf32> to vector<8x32xf32>
    %101 = vector.extract_strided_slice %98 {offsets = [0, 64], sizes = [8, 32], strides = [1, 1]} : vector<8x128xf32> to vector<8x32xf32>
    %102 = vector.extract_strided_slice %98 {offsets = [0, 96], sizes = [8, 32], strides = [1, 1]} : vector<8x128xf32> to vector<8x32xf32>
    %103 = arith.mulf %100, %82 : vector<8x32xf32>
    %104 = arith.mulf %99, %101 : vector<8x32xf32>
    %105 = arith.addf %103, %104 : vector<8x32xf32>
    %106 = math.tanh %105 : vector<8x32xf32>
    %107 = arith.mulf %102, %106 : vector<8x32xf32>
    %c0_23 = arith.constant 0 : index
    %c96 = arith.constant 96 : index
    %108 = vector.load %arg4[%c0_23, %c96] : memref<8x512xf32, #tpu.memory_space<vmem>>, vector<8x32xf32>
    tpu.vector_store %arg4[%c0_23, %c96], %107 {strides = array<i32>} : memref<8x512xf32, #tpu.memory_space<vmem>>, vector<8x32xf32>,
    %c0_24 = arith.constant 0 : index
    %c4 = arith.constant 4 : index
    %109 = vector.load %arg0[%c0_24, %c4] : memref<8x16xf32, #tpu.memory_space<vmem>>, vector<8x1xf32>
    %110 = vector.broadcast %109 : vector<8x1xf32> to vector<8x128xf32>
    %111 = vector.broadcast %1 : vector<1x128xf32> to vector<8x128xf32>
    %112 = arith.mulf %110, %111 : vector<8x128xf32>
    %113 = vector.broadcast %2 : vector<1x128xf32> to vector<8x128xf32>
    %114 = arith.addf %112, %113 : vector<8x128xf32>
    %115 = arith.truncf %107 : vector<8x32xf32> to vector<8x32xbf16>
    %cst_25 = arith.constant dense<0.000000e+00> : vector<8x128xf32>
    %116 = tpu.matmul %115, %0, %cst_25 {dimension_numbers = #tpu.dot_dimension_numbers<[1], [0], [0], [1], [0, 0, 1, 1], [], []>} : vector<8x32xbf16>, vector<32x128xbf16>, vector<8x128xf32> -> vector<8x128xf32>
    %117 = arith.addf %114, %116 : vector<8x128xf32>
    %118 = arith.mulf %11, %117 : vector<8x128xf32>
    %119 = math.tanh %118 : vector<8x128xf32>
    %120 = arith.mulf %11, %119 : vector<8x128xf32>
    %121 = arith.addf %120, %14 : vector<8x128xf32>
    %122 = vector.extract_strided_slice %121 {offsets = [0, 0], sizes = [8, 32], strides = [1, 1]} : vector<8x128xf32> to vector<8x32xf32>
    %123 = vector.extract_strided_slice %121 {offsets = [0, 32], sizes = [8, 32], strides = [1, 1]} : vector<8x128xf32> to vector<8x32xf32>
    %124 = vector.extract_strided_slice %121 {offsets = [0, 64], sizes = [8, 32], strides = [1, 1]} : vector<8x128xf32> to vector<8x32xf32>
    %125 = vector.extract_strided_slice %121 {offsets = [0, 96], sizes = [8, 32], strides = [1, 1]} : vector<8x128xf32> to vector<8x32xf32>
    %126 = arith.mulf %123, %105 : vector<8x32xf32>
    %127 = arith.mulf %122, %124 : vector<8x32xf32>
    %128 = arith.addf %126, %127 : vector<8x32xf32>
    %129 = math.tanh %128 : vector<8x32xf32>
    %130 = arith.mulf %125, %129 : vector<8x32xf32>
    %c0_26 = arith.constant 0 : index
    %c128 = arith.constant 128 : index
    %131 = vector.load %arg4[%c0_26, %c128] : memref<8x512xf32, #tpu.memory_space<vmem>>, vector<8x32xf32>
    tpu.vector_store %arg4[%c0_26, %c128], %130 {strides = array<i32>} : memref<8x512xf32, #tpu.memory_space<vmem>>, vector<8x32xf32>,
    %c0_27 = arith.constant 0 : index
    %c5 = arith.constant 5 : index
    %132 = vector.load %arg0[%c0_27, %c5] : memref<8x16xf32, #tpu.memory_space<vmem>>, vector<8x1xf32>
    %133 = vector.broadcast %132 : vector<8x1xf32> to vector<8x128xf32>
    %134 = vector.broadcast %1 : vector<1x128xf32> to vector<8x128xf32>
    %135 = arith.mulf %133, %134 : vector<8x128xf32>
    %136 = vector.broadcast %2 : vector<1x128xf32> to vector<8x128xf32>
    %137 = arith.addf %135, %136 : vector<8x128xf32>
    %138 = arith.truncf %130 : vector<8x32xf32> to vector<8x32xbf16>
    %cst_28 = arith.constant dense<0.000000e+00> : vector<8x128xf32>
    %139 = tpu.matmul %138, %0, %cst_28 {dimension_numbers = #tpu.dot_dimension_numbers<[1], [0], [0], [1], [0, 0, 1, 1], [], []>} : vector<8x32xbf16>, vector<32x128xbf16>, vector<8x128xf32> -> vector<8x128xf32>
    %140 = arith.addf %137, %139 : vector<8x128xf32>
    %141 = arith.mulf %11, %140 : vector<8x128xf32>
    %142 = math.tanh %141 : vector<8x128xf32>
    %143 = arith.mulf %11, %142 : vector<8x128xf32>
    %144 = arith.addf %143, %14 : vector<8x128xf32>
    %145 = vector.extract_strided_slice %144 {offsets = [0, 0], sizes = [8, 32], strides = [1, 1]} : vector<8x128xf32> to vector<8x32xf32>
    %146 = vector.extract_strided_slice %144 {offsets = [0, 32], sizes = [8, 32], strides = [1, 1]} : vector<8x128xf32> to vector<8x32xf32>
    %147 = vector.extract_strided_slice %144 {offsets = [0, 64], sizes = [8, 32], strides = [1, 1]} : vector<8x128xf32> to vector<8x32xf32>
    %148 = vector.extract_strided_slice %144 {offsets = [0, 96], sizes = [8, 32], strides = [1, 1]} : vector<8x128xf32> to vector<8x32xf32>
    %149 = arith.mulf %146, %128 : vector<8x32xf32>
    %150 = arith.mulf %145, %147 : vector<8x32xf32>
    %151 = arith.addf %149, %150 : vector<8x32xf32>
    %152 = math.tanh %151 : vector<8x32xf32>
    %153 = arith.mulf %148, %152 : vector<8x32xf32>
    %c0_29 = arith.constant 0 : index
    %c160 = arith.constant 160 : index
    %154 = vector.load %arg4[%c0_29, %c160] : memref<8x512xf32, #tpu.memory_space<vmem>>, vector<8x32xf32>
    tpu.vector_store %arg4[%c0_29, %c160], %153 {strides = array<i32>} : memref<8x512xf32, #tpu.memory_space<vmem>>, vector<8x32xf32>,
    %c0_30 = arith.constant 0 : index
    %c6 = arith.constant 6 : index
    %155 = vector.load %arg0[%c0_30, %c6] : memref<8x16xf32, #tpu.memory_space<vmem>>, vector<8x1xf32>
    %156 = vector.broadcast %155 : vector<8x1xf32> to vector<8x128xf32>
    %157 = vector.broadcast %1 : vector<1x128xf32> to vector<8x128xf32>
    %158 = arith.mulf %156, %157 : vector<8x128xf32>
    %159 = vector.broadcast %2 : vector<1x128xf32> to vector<8x128xf32>
    %160 = arith.addf %158, %159 : vector<8x128xf32>
    %161 = arith.truncf %153 : vector<8x32xf32> to vector<8x32xbf16>
    %cst_31 = arith.constant dense<0.000000e+00> : vector<8x128xf32>
    %162 = tpu.matmul %161, %0, %cst_31 {dimension_numbers = #tpu.dot_dimension_numbers<[1], [0], [0], [1], [0, 0, 1, 1], [], []>} : vector<8x32xbf16>, vector<32x128xbf16>, vector<8x128xf32> -> vector<8x128xf32>
    %163 = arith.addf %160, %162 : vector<8x128xf32>
    %164 = arith.mulf %11, %163 : vector<8x128xf32>
    %165 = math.tanh %164 : vector<8x128xf32>
    %166 = arith.mulf %11, %165 : vector<8x128xf32>
    %167 = arith.addf %166, %14 : vector<8x128xf32>
    %168 = vector.extract_strided_slice %167 {offsets = [0, 0], sizes = [8, 32], strides = [1, 1]} : vector<8x128xf32> to vector<8x32xf32>
    %169 = vector.extract_strided_slice %167 {offsets = [0, 32], sizes = [8, 32], strides = [1, 1]} : vector<8x128xf32> to vector<8x32xf32>
    %170 = vector.extract_strided_slice %167 {offsets = [0, 64], sizes = [8, 32], strides = [1, 1]} : vector<8x128xf32> to vector<8x32xf32>
    %171 = vector.extract_strided_slice %167 {offsets = [0, 96], sizes = [8, 32], strides = [1, 1]} : vector<8x128xf32> to vector<8x32xf32>
    %172 = arith.mulf %169, %151 : vector<8x32xf32>
    %173 = arith.mulf %168, %170 : vector<8x32xf32>
    %174 = arith.addf %172, %173 : vector<8x32xf32>
    %175 = math.tanh %174 : vector<8x32xf32>
    %176 = arith.mulf %171, %175 : vector<8x32xf32>
    %c0_32 = arith.constant 0 : index
    %c192 = arith.constant 192 : index
    %177 = vector.load %arg4[%c0_32, %c192] : memref<8x512xf32, #tpu.memory_space<vmem>>, vector<8x32xf32>
    tpu.vector_store %arg4[%c0_32, %c192], %176 {strides = array<i32>} : memref<8x512xf32, #tpu.memory_space<vmem>>, vector<8x32xf32>,
    %c0_33 = arith.constant 0 : index
    %c7 = arith.constant 7 : index
    %178 = vector.load %arg0[%c0_33, %c7] : memref<8x16xf32, #tpu.memory_space<vmem>>, vector<8x1xf32>
    %179 = vector.broadcast %178 : vector<8x1xf32> to vector<8x128xf32>
    %180 = vector.broadcast %1 : vector<1x128xf32> to vector<8x128xf32>
    %181 = arith.mulf %179, %180 : vector<8x128xf32>
    %182 = vector.broadcast %2 : vector<1x128xf32> to vector<8x128xf32>
    %183 = arith.addf %181, %182 : vector<8x128xf32>
    %184 = arith.truncf %176 : vector<8x32xf32> to vector<8x32xbf16>
    %cst_34 = arith.constant dense<0.000000e+00> : vector<8x128xf32>
    %185 = tpu.matmul %184, %0, %cst_34 {dimension_numbers = #tpu.dot_dimension_numbers<[1], [0], [0], [1], [0, 0, 1, 1], [], []>} : vector<8x32xbf16>, vector<32x128xbf16>, vector<8x128xf32> -> vector<8x128xf32>
    %186 = arith.addf %183, %185 : vector<8x128xf32>
    %187 = arith.mulf %11, %186 : vector<8x128xf32>
    %188 = math.tanh %187 : vector<8x128xf32>
    %189 = arith.mulf %11, %188 : vector<8x128xf32>
    %190 = arith.addf %189, %14 : vector<8x128xf32>
    %191 = vector.extract_strided_slice %190 {offsets = [0, 0], sizes = [8, 32], strides = [1, 1]} : vector<8x128xf32> to vector<8x32xf32>
    %192 = vector.extract_strided_slice %190 {offsets = [0, 32], sizes = [8, 32], strides = [1, 1]} : vector<8x128xf32> to vector<8x32xf32>
    %193 = vector.extract_strided_slice %190 {offsets = [0, 64], sizes = [8, 32], strides = [1, 1]} : vector<8x128xf32> to vector<8x32xf32>
    %194 = vector.extract_strided_slice %190 {offsets = [0, 96], sizes = [8, 32], strides = [1, 1]} : vector<8x128xf32> to vector<8x32xf32>
    %195 = arith.mulf %192, %174 : vector<8x32xf32>
    %196 = arith.mulf %191, %193 : vector<8x32xf32>
    %197 = arith.addf %195, %196 : vector<8x32xf32>
    %198 = math.tanh %197 : vector<8x32xf32>
    %199 = arith.mulf %194, %198 : vector<8x32xf32>
    %c0_35 = arith.constant 0 : index
    %c224 = arith.constant 224 : index
    %200 = vector.load %arg4[%c0_35, %c224] : memref<8x512xf32, #tpu.memory_space<vmem>>, vector<8x32xf32>
    tpu.vector_store %arg4[%c0_35, %c224], %199 {strides = array<i32>} : memref<8x512xf32, #tpu.memory_space<vmem>>, vector<8x32xf32>,
    %c0_36 = arith.constant 0 : index
    %c8 = arith.constant 8 : index
    %201 = vector.load %arg0[%c0_36, %c8] : memref<8x16xf32, #tpu.memory_space<vmem>>, vector<8x1xf32>
    %202 = vector.broadcast %201 : vector<8x1xf32> to vector<8x128xf32>
    %203 = vector.broadcast %1 : vector<1x128xf32> to vector<8x128xf32>
    %204 = arith.mulf %202, %203 : vector<8x128xf32>
    %205 = vector.broadcast %2 : vector<1x128xf32> to vector<8x128xf32>
    %206 = arith.addf %204, %205 : vector<8x128xf32>
    %207 = arith.truncf %199 : vector<8x32xf32> to vector<8x32xbf16>
    %cst_37 = arith.constant dense<0.000000e+00> : vector<8x128xf32>
    %208 = tpu.matmul %207, %0, %cst_37 {dimension_numbers = #tpu.dot_dimension_numbers<[1], [0], [0], [1], [0, 0, 1, 1], [], []>} : vector<8x32xbf16>, vector<32x128xbf16>, vector<8x128xf32> -> vector<8x128xf32>
    %209 = arith.addf %206, %208 : vector<8x128xf32>
    %210 = arith.mulf %11, %209 : vector<8x128xf32>
    %211 = math.tanh %210 : vector<8x128xf32>
    %212 = arith.mulf %11, %211 : vector<8x128xf32>
    %213 = arith.addf %212, %14 : vector<8x128xf32>
    %214 = vector.extract_strided_slice %213 {offsets = [0, 0], sizes = [8, 32], strides = [1, 1]} : vector<8x128xf32> to vector<8x32xf32>
    %215 = vector.extract_strided_slice %213 {offsets = [0, 32], sizes = [8, 32], strides = [1, 1]} : vector<8x128xf32> to vector<8x32xf32>
    %216 = vector.extract_strided_slice %213 {offsets = [0, 64], sizes = [8, 32], strides = [1, 1]} : vector<8x128xf32> to vector<8x32xf32>
    %217 = vector.extract_strided_slice %213 {offsets = [0, 96], sizes = [8, 32], strides = [1, 1]} : vector<8x128xf32> to vector<8x32xf32>
    %218 = arith.mulf %215, %197 : vector<8x32xf32>
    %219 = arith.mulf %214, %216 : vector<8x32xf32>
    %220 = arith.addf %218, %219 : vector<8x32xf32>
    %221 = math.tanh %220 : vector<8x32xf32>
    %222 = arith.mulf %217, %221 : vector<8x32xf32>
    %c0_38 = arith.constant 0 : index
    %c256 = arith.constant 256 : index
    %223 = vector.load %arg4[%c0_38, %c256] : memref<8x512xf32, #tpu.memory_space<vmem>>, vector<8x32xf32>
    tpu.vector_store %arg4[%c0_38, %c256], %222 {strides = array<i32>} : memref<8x512xf32, #tpu.memory_space<vmem>>, vector<8x32xf32>,
    %c0_39 = arith.constant 0 : index
    %c9 = arith.constant 9 : index
    %224 = vector.load %arg0[%c0_39, %c9] : memref<8x16xf32, #tpu.memory_space<vmem>>, vector<8x1xf32>
    %225 = vector.broadcast %224 : vector<8x1xf32> to vector<8x128xf32>
    %226 = vector.broadcast %1 : vector<1x128xf32> to vector<8x128xf32>
    %227 = arith.mulf %225, %226 : vector<8x128xf32>
    %228 = vector.broadcast %2 : vector<1x128xf32> to vector<8x128xf32>
    %229 = arith.addf %227, %228 : vector<8x128xf32>
    %230 = arith.truncf %222 : vector<8x32xf32> to vector<8x32xbf16>
    %cst_40 = arith.constant dense<0.000000e+00> : vector<8x128xf32>
    %231 = tpu.matmul %230, %0, %cst_40 {dimension_numbers = #tpu.dot_dimension_numbers<[1], [0], [0], [1], [0, 0, 1, 1], [], []>} : vector<8x32xbf16>, vector<32x128xbf16>, vector<8x128xf32> -> vector<8x128xf32>
    %232 = arith.addf %229, %231 : vector<8x128xf32>
    %233 = arith.mulf %11, %232 : vector<8x128xf32>
    %234 = math.tanh %233 : vector<8x128xf32>
    %235 = arith.mulf %11, %234 : vector<8x128xf32>
    %236 = arith.addf %235, %14 : vector<8x128xf32>
    %237 = vector.extract_strided_slice %236 {offsets = [0, 0], sizes = [8, 32], strides = [1, 1]} : vector<8x128xf32> to vector<8x32xf32>
    %238 = vector.extract_strided_slice %236 {offsets = [0, 32], sizes = [8, 32], strides = [1, 1]} : vector<8x128xf32> to vector<8x32xf32>
    %239 = vector.extract_strided_slice %236 {offsets = [0, 64], sizes = [8, 32], strides = [1, 1]} : vector<8x128xf32> to vector<8x32xf32>
    %240 = vector.extract_strided_slice %236 {offsets = [0, 96], sizes = [8, 32], strides = [1, 1]} : vector<8x128xf32> to vector<8x32xf32>
    %241 = arith.mulf %238, %220 : vector<8x32xf32>
    %242 = arith.mulf %237, %239 : vector<8x32xf32>
    %243 = arith.addf %241, %242 : vector<8x32xf32>
    %244 = math.tanh %243 : vector<8x32xf32>
    %245 = arith.mulf %240, %244 : vector<8x32xf32>
    %c0_41 = arith.constant 0 : index
    %c288 = arith.constant 288 : index
    %246 = vector.load %arg4[%c0_41, %c288] : memref<8x512xf32, #tpu.memory_space<vmem>>, vector<8x32xf32>
    tpu.vector_store %arg4[%c0_41, %c288], %245 {strides = array<i32>} : memref<8x512xf32, #tpu.memory_space<vmem>>, vector<8x32xf32>,
    %c0_42 = arith.constant 0 : index
    %c10 = arith.constant 10 : index
    %247 = vector.load %arg0[%c0_42, %c10] : memref<8x16xf32, #tpu.memory_space<vmem>>, vector<8x1xf32>
    %248 = vector.broadcast %247 : vector<8x1xf32> to vector<8x128xf32>
    %249 = vector.broadcast %1 : vector<1x128xf32> to vector<8x128xf32>
    %250 = arith.mulf %248, %249 : vector<8x128xf32>
    %251 = vector.broadcast %2 : vector<1x128xf32> to vector<8x128xf32>
    %252 = arith.addf %250, %251 : vector<8x128xf32>
    %253 = arith.truncf %245 : vector<8x32xf32> to vector<8x32xbf16>
    %cst_43 = arith.constant dense<0.000000e+00> : vector<8x128xf32>
    %254 = tpu.matmul %253, %0, %cst_43 {dimension_numbers = #tpu.dot_dimension_numbers<[1], [0], [0], [1], [0, 0, 1, 1], [], []>} : vector<8x32xbf16>, vector<32x128xbf16>, vector<8x128xf32> -> vector<8x128xf32>
    %255 = arith.addf %252, %254 : vector<8x128xf32>
    %256 = arith.mulf %11, %255 : vector<8x128xf32>
    %257 = math.tanh %256 : vector<8x128xf32>
    %258 = arith.mulf %11, %257 : vector<8x128xf32>
    %259 = arith.addf %258, %14 : vector<8x128xf32>
    %260 = vector.extract_strided_slice %259 {offsets = [0, 0], sizes = [8, 32], strides = [1, 1]} : vector<8x128xf32> to vector<8x32xf32>
    %261 = vector.extract_strided_slice %259 {offsets = [0, 32], sizes = [8, 32], strides = [1, 1]} : vector<8x128xf32> to vector<8x32xf32>
    %262 = vector.extract_strided_slice %259 {offsets = [0, 64], sizes = [8, 32], strides = [1, 1]} : vector<8x128xf32> to vector<8x32xf32>
    %263 = vector.extract_strided_slice %259 {offsets = [0, 96], sizes = [8, 32], strides = [1, 1]} : vector<8x128xf32> to vector<8x32xf32>
    %264 = arith.mulf %261, %243 : vector<8x32xf32>
    %265 = arith.mulf %260, %262 : vector<8x32xf32>
    %266 = arith.addf %264, %265 : vector<8x32xf32>
    %267 = math.tanh %266 : vector<8x32xf32>
    %268 = arith.mulf %263, %267 : vector<8x32xf32>
    %c0_44 = arith.constant 0 : index
    %c320 = arith.constant 320 : index
    %269 = vector.load %arg4[%c0_44, %c320] : memref<8x512xf32, #tpu.memory_space<vmem>>, vector<8x32xf32>
    tpu.vector_store %arg4[%c0_44, %c320], %268 {strides = array<i32>} : memref<8x512xf32, #tpu.memory_space<vmem>>, vector<8x32xf32>,
    %c0_45 = arith.constant 0 : index
    %c11 = arith.constant 11 : index
    %270 = vector.load %arg0[%c0_45, %c11] : memref<8x16xf32, #tpu.memory_space<vmem>>, vector<8x1xf32>
    %271 = vector.broadcast %270 : vector<8x1xf32> to vector<8x128xf32>
    %272 = vector.broadcast %1 : vector<1x128xf32> to vector<8x128xf32>
    %273 = arith.mulf %271, %272 : vector<8x128xf32>
    %274 = vector.broadcast %2 : vector<1x128xf32> to vector<8x128xf32>
    %275 = arith.addf %273, %274 : vector<8x128xf32>
    %276 = arith.truncf %268 : vector<8x32xf32> to vector<8x32xbf16>
    %cst_46 = arith.constant dense<0.000000e+00> : vector<8x128xf32>
    %277 = tpu.matmul %276, %0, %cst_46 {dimension_numbers = #tpu.dot_dimension_numbers<[1], [0], [0], [1], [0, 0, 1, 1], [], []>} : vector<8x32xbf16>, vector<32x128xbf16>, vector<8x128xf32> -> vector<8x128xf32>
    %278 = arith.addf %275, %277 : vector<8x128xf32>
    %279 = arith.mulf %11, %278 : vector<8x128xf32>
    %280 = math.tanh %279 : vector<8x128xf32>
    %281 = arith.mulf %11, %280 : vector<8x128xf32>
    %282 = arith.addf %281, %14 : vector<8x128xf32>
    %283 = vector.extract_strided_slice %282 {offsets = [0, 0], sizes = [8, 32], strides = [1, 1]} : vector<8x128xf32> to vector<8x32xf32>
    %284 = vector.extract_strided_slice %282 {offsets = [0, 32], sizes = [8, 32], strides = [1, 1]} : vector<8x128xf32> to vector<8x32xf32>
    %285 = vector.extract_strided_slice %282 {offsets = [0, 64], sizes = [8, 32], strides = [1, 1]} : vector<8x128xf32> to vector<8x32xf32>
    %286 = vector.extract_strided_slice %282 {offsets = [0, 96], sizes = [8, 32], strides = [1, 1]} : vector<8x128xf32> to vector<8x32xf32>
    %287 = arith.mulf %284, %266 : vector<8x32xf32>
    %288 = arith.mulf %283, %285 : vector<8x32xf32>
    %289 = arith.addf %287, %288 : vector<8x32xf32>
    %290 = math.tanh %289 : vector<8x32xf32>
    %291 = arith.mulf %286, %290 : vector<8x32xf32>
    %c0_47 = arith.constant 0 : index
    %c352 = arith.constant 352 : index
    %292 = vector.load %arg4[%c0_47, %c352] : memref<8x512xf32, #tpu.memory_space<vmem>>, vector<8x32xf32>
    tpu.vector_store %arg4[%c0_47, %c352], %291 {strides = array<i32>} : memref<8x512xf32, #tpu.memory_space<vmem>>, vector<8x32xf32>,
    %c0_48 = arith.constant 0 : index
    %c12 = arith.constant 12 : index
    %293 = vector.load %arg0[%c0_48, %c12] : memref<8x16xf32, #tpu.memory_space<vmem>>, vector<8x1xf32>
    %294 = vector.broadcast %293 : vector<8x1xf32> to vector<8x128xf32>
    %295 = vector.broadcast %1 : vector<1x128xf32> to vector<8x128xf32>
    %296 = arith.mulf %294, %295 : vector<8x128xf32>
    %297 = vector.broadcast %2 : vector<1x128xf32> to vector<8x128xf32>
    %298 = arith.addf %296, %297 : vector<8x128xf32>
    %299 = arith.truncf %291 : vector<8x32xf32> to vector<8x32xbf16>
    %cst_49 = arith.constant dense<0.000000e+00> : vector<8x128xf32>
    %300 = tpu.matmul %299, %0, %cst_49 {dimension_numbers = #tpu.dot_dimension_numbers<[1], [0], [0], [1], [0, 0, 1, 1], [], []>} : vector<8x32xbf16>, vector<32x128xbf16>, vector<8x128xf32> -> vector<8x128xf32>
    %301 = arith.addf %298, %300 : vector<8x128xf32>
    %302 = arith.mulf %11, %301 : vector<8x128xf32>
    %303 = math.tanh %302 : vector<8x128xf32>
    %304 = arith.mulf %11, %303 : vector<8x128xf32>
    %305 = arith.addf %304, %14 : vector<8x128xf32>
    %306 = vector.extract_strided_slice %305 {offsets = [0, 0], sizes = [8, 32], strides = [1, 1]} : vector<8x128xf32> to vector<8x32xf32>
    %307 = vector.extract_strided_slice %305 {offsets = [0, 32], sizes = [8, 32], strides = [1, 1]} : vector<8x128xf32> to vector<8x32xf32>
    %308 = vector.extract_strided_slice %305 {offsets = [0, 64], sizes = [8, 32], strides = [1, 1]} : vector<8x128xf32> to vector<8x32xf32>
    %309 = vector.extract_strided_slice %305 {offsets = [0, 96], sizes = [8, 32], strides = [1, 1]} : vector<8x128xf32> to vector<8x32xf32>
    %310 = arith.mulf %307, %289 : vector<8x32xf32>
    %311 = arith.mulf %306, %308 : vector<8x32xf32>
    %312 = arith.addf %310, %311 : vector<8x32xf32>
    %313 = math.tanh %312 : vector<8x32xf32>
    %314 = arith.mulf %309, %313 : vector<8x32xf32>
    %c0_50 = arith.constant 0 : index
    %c384 = arith.constant 384 : index
    %315 = vector.load %arg4[%c0_50, %c384] : memref<8x512xf32, #tpu.memory_space<vmem>>, vector<8x32xf32>
    tpu.vector_store %arg4[%c0_50, %c384], %314 {strides = array<i32>} : memref<8x512xf32, #tpu.memory_space<vmem>>, vector<8x32xf32>,
    %c0_51 = arith.constant 0 : index
    %c13 = arith.constant 13 : index
    %316 = vector.load %arg0[%c0_51, %c13] : memref<8x16xf32, #tpu.memory_space<vmem>>, vector<8x1xf32>
    %317 = vector.broadcast %316 : vector<8x1xf32> to vector<8x128xf32>
    %318 = vector.broadcast %1 : vector<1x128xf32> to vector<8x128xf32>
    %319 = arith.mulf %317, %318 : vector<8x128xf32>
    %320 = vector.broadcast %2 : vector<1x128xf32> to vector<8x128xf32>
    %321 = arith.addf %319, %320 : vector<8x128xf32>
    %322 = arith.truncf %314 : vector<8x32xf32> to vector<8x32xbf16>
    %cst_52 = arith.constant dense<0.000000e+00> : vector<8x128xf32>
    %323 = tpu.matmul %322, %0, %cst_52 {dimension_numbers = #tpu.dot_dimension_numbers<[1], [0], [0], [1], [0, 0, 1, 1], [], []>} : vector<8x32xbf16>, vector<32x128xbf16>, vector<8x128xf32> -> vector<8x128xf32>
    %324 = arith.addf %321, %323 : vector<8x128xf32>
    %325 = arith.mulf %11, %324 : vector<8x128xf32>
    %326 = math.tanh %325 : vector<8x128xf32>
    %327 = arith.mulf %11, %326 : vector<8x128xf32>
    %328 = arith.addf %327, %14 : vector<8x128xf32>
    %329 = vector.extract_strided_slice %328 {offsets = [0, 0], sizes = [8, 32], strides = [1, 1]} : vector<8x128xf32> to vector<8x32xf32>
    %330 = vector.extract_strided_slice %328 {offsets = [0, 32], sizes = [8, 32], strides = [1, 1]} : vector<8x128xf32> to vector<8x32xf32>
    %331 = vector.extract_strided_slice %328 {offsets = [0, 64], sizes = [8, 32], strides = [1, 1]} : vector<8x128xf32> to vector<8x32xf32>
    %332 = vector.extract_strided_slice %328 {offsets = [0, 96], sizes = [8, 32], strides = [1, 1]} : vector<8x128xf32> to vector<8x32xf32>
    %333 = arith.mulf %330, %312 : vector<8x32xf32>
    %334 = arith.mulf %329, %331 : vector<8x32xf32>
    %335 = arith.addf %333, %334 : vector<8x32xf32>
    %336 = math.tanh %335 : vector<8x32xf32>
    %337 = arith.mulf %332, %336 : vector<8x32xf32>
    %c0_53 = arith.constant 0 : index
    %c416 = arith.constant 416 : index
    %338 = vector.load %arg4[%c0_53, %c416] : memref<8x512xf32, #tpu.memory_space<vmem>>, vector<8x32xf32>
    tpu.vector_store %arg4[%c0_53, %c416], %337 {strides = array<i32>} : memref<8x512xf32, #tpu.memory_space<vmem>>, vector<8x32xf32>,
    %c0_54 = arith.constant 0 : index
    %c14 = arith.constant 14 : index
    %339 = vector.load %arg0[%c0_54, %c14] : memref<8x16xf32, #tpu.memory_space<vmem>>, vector<8x1xf32>
    %340 = vector.broadcast %339 : vector<8x1xf32> to vector<8x128xf32>
    %341 = vector.broadcast %1 : vector<1x128xf32> to vector<8x128xf32>
    %342 = arith.mulf %340, %341 : vector<8x128xf32>
    %343 = vector.broadcast %2 : vector<1x128xf32> to vector<8x128xf32>
    %344 = arith.addf %342, %343 : vector<8x128xf32>
    %345 = arith.truncf %337 : vector<8x32xf32> to vector<8x32xbf16>
    %cst_55 = arith.constant dense<0.000000e+00> : vector<8x128xf32>
    %346 = tpu.matmul %345, %0, %cst_55 {dimension_numbers = #tpu.dot_dimension_numbers<[1], [0], [0], [1], [0, 0, 1, 1], [], []>} : vector<8x32xbf16>, vector<32x128xbf16>, vector<8x128xf32> -> vector<8x128xf32>
    %347 = arith.addf %344, %346 : vector<8x128xf32>
    %348 = arith.mulf %11, %347 : vector<8x128xf32>
    %349 = math.tanh %348 : vector<8x128xf32>
    %350 = arith.mulf %11, %349 : vector<8x128xf32>
    %351 = arith.addf %350, %14 : vector<8x128xf32>
    %352 = vector.extract_strided_slice %351 {offsets = [0, 0], sizes = [8, 32], strides = [1, 1]} : vector<8x128xf32> to vector<8x32xf32>
    %353 = vector.extract_strided_slice %351 {offsets = [0, 32], sizes = [8, 32], strides = [1, 1]} : vector<8x128xf32> to vector<8x32xf32>
    %354 = vector.extract_strided_slice %351 {offsets = [0, 64], sizes = [8, 32], strides = [1, 1]} : vector<8x128xf32> to vector<8x32xf32>
    %355 = vector.extract_strided_slice %351 {offsets = [0, 96], sizes = [8, 32], strides = [1, 1]} : vector<8x128xf32> to vector<8x32xf32>
    %356 = arith.mulf %353, %335 : vector<8x32xf32>
    %357 = arith.mulf %352, %354 : vector<8x32xf32>
    %358 = arith.addf %356, %357 : vector<8x32xf32>
    %359 = math.tanh %358 : vector<8x32xf32>
    %360 = arith.mulf %355, %359 : vector<8x32xf32>
    %c0_56 = arith.constant 0 : index
    %c448 = arith.constant 448 : index
    %361 = vector.load %arg4[%c0_56, %c448] : memref<8x512xf32, #tpu.memory_space<vmem>>, vector<8x32xf32>
    tpu.vector_store %arg4[%c0_56, %c448], %360 {strides = array<i32>} : memref<8x512xf32, #tpu.memory_space<vmem>>, vector<8x32xf32>,
    %c0_57 = arith.constant 0 : index
    %c15 = arith.constant 15 : index
    %362 = vector.load %arg0[%c0_57, %c15] : memref<8x16xf32, #tpu.memory_space<vmem>>, vector<8x1xf32>
    %363 = vector.broadcast %362 : vector<8x1xf32> to vector<8x128xf32>
    %364 = vector.broadcast %1 : vector<1x128xf32> to vector<8x128xf32>
    %365 = arith.mulf %363, %364 : vector<8x128xf32>
    %366 = vector.broadcast %2 : vector<1x128xf32> to vector<8x128xf32>
    %367 = arith.addf %365, %366 : vector<8x128xf32>
    %368 = arith.truncf %360 : vector<8x32xf32> to vector<8x32xbf16>
    %cst_58 = arith.constant dense<0.000000e+00> : vector<8x128xf32>
    %369 = tpu.matmul %368, %0, %cst_58 {dimension_numbers = #tpu.dot_dimension_numbers<[1], [0], [0], [1], [0, 0, 1, 1], [], []>} : vector<8x32xbf16>, vector<32x128xbf16>, vector<8x128xf32> -> vector<8x128xf32>
    %370 = arith.addf %367, %369 : vector<8x128xf32>
    %371 = arith.mulf %11, %370 : vector<8x128xf32>
    %372 = math.tanh %371 : vector<8x128xf32>
    %373 = arith.mulf %11, %372 : vector<8x128xf32>
    %374 = arith.addf %373, %14 : vector<8x128xf32>
    %375 = vector.extract_strided_slice %374 {offsets = [0, 0], sizes = [8, 32], strides = [1, 1]} : vector<8x128xf32> to vector<8x32xf32>
    %376 = vector.extract_strided_slice %374 {offsets = [0, 32], sizes = [8, 32], strides = [1, 1]} : vector<8x128xf32> to vector<8x32xf32>
    %377 = vector.extract_strided_slice %374 {offsets = [0, 64], sizes = [8, 32], strides = [1, 1]} : vector<8x128xf32> to vector<8x32xf32>
    %378 = vector.extract_strided_slice %374 {offsets = [0, 96], sizes = [8, 32], strides = [1, 1]} : vector<8x128xf32> to vector<8x32xf32>
    %379 = arith.mulf %376, %358 : vector<8x32xf32>
    %380 = arith.mulf %375, %377 : vector<8x32xf32>
    %381 = arith.addf %379, %380 : vector<8x32xf32>
    %382 = math.tanh %381 : vector<8x32xf32>
    %383 = arith.mulf %378, %382 : vector<8x32xf32>
    %c0_59 = arith.constant 0 : index
    %c480 = arith.constant 480 : index
    %384 = vector.load %arg4[%c0_59, %c480] : memref<8x512xf32, #tpu.memory_space<vmem>>, vector<8x32xf32>
    tpu.vector_store %arg4[%c0_59, %c480], %383 {strides = array<i32>} : memref<8x512xf32, #tpu.memory_space<vmem>>, vector<8x32xf32>,
    return
  }
}

</mosaic_0001>

<llo_original>
// kernel: mdlstm_forward.1
$region0: #{mdlstm_forward.1}
  #allocation0 [shape = 'u32[]', space=smem, size = 0x4, offset = 0x4, fixed_abs, tag = 'smem constant byte address 0x4 - core index']
  #allocation1 [shape = 'u32[144,128]{1,0:T(1,128)}', space=vmem, size = 0x12000, scoped, tag = 'internal scratch']
  %s0 = inlined_call_operand.vmem [shape: f32[8,16], index: 0, kind: input, shape index: {}]
  %s1 = inlined_call_operand.vmem [shape: f32[1,128], index: 1, kind: input, shape index: {}]
  %s2 = inlined_call_operand.vmem [shape: f32[1,128], index: 2, kind: input, shape index: {}]
  %s3 = inlined_call_operand.vmem [shape: bf16[32,128], index: 3, kind: input, shape index: {}]
  %s4 = inlined_call_operand.vmem [shape: f32[8,512], index: 4, kind: output, shape index: {}]
  %s5 = sld [smem:[#allocation0]]
  $region26: #{mdlstm_forward.1} parent=0
    _
  %s7 = ssub.s32 1, %s5
  %s8 = scalar_select 0, %s7, %s5
  // Predicated region
  $region2: #{mdlstm_forward.1} parent=0 // pred_check
    _
  $region3: #{mdlstm_forward.1} parent=0 // pred_check_branch
    %10 = sbr.rel (0) target = $region5
  $region4: #{mdlstm_forward.1} parent=0 // pred_region
    _
  $region5: #{mdlstm_forward.1} parent=0 // pred_fallthru
    _
  // Predicated region
  $region6: #{mdlstm_forward.1} parent=0 // pred_check
    _
  $region7: #{mdlstm_forward.1} parent=0 // pred_check_branch
    %12 = sbr.rel (0) target = $region9
  $region8: #{mdlstm_forward.1} parent=0 // pred_region
    _
  $region9: #{mdlstm_forward.1} parent=0 // pred_fallthru
    _
  // Predicated region
  $region10: #{mdlstm_forward.1} parent=0 // pred_check
    _
  $region11: #{mdlstm_forward.1} parent=0 // pred_check_branch
    %14 = sbr.rel (0) target = $region13
  $region12: #{mdlstm_forward.1} parent=0 // pred_region
    _
  $region13: #{mdlstm_forward.1} parent=0 // pred_fallthru
    _
  // Predicated region
  $region14: #{mdlstm_forward.1} parent=0 // pred_check
    _
  $region15: #{mdlstm_forward.1} parent=0 // pred_check_branch
    %16 = sbr.rel (0) target = $region17
  $region16: #{mdlstm_forward.1} parent=0 // pred_region
    _
  $region17: #{mdlstm_forward.1} parent=0 // pred_fallthru
    _
  %v18 = vld [vmem:[%s3] sm:$0xf]
  %v19 = vld [vmem:[%s3 + $0x4] sm:$0xf]
  %v20 = vld [vmem:[%s3 + $0x8] sm:$0xf]
  %v21 = vld [vmem:[%s3 + $0xc] sm:$0xf]
  %v22 = vld [vmem:[%s1] sm:$0x1]
  %v23 = vld [vmem:[%s2] sm:$0x1]
  %v24 = vlaneseq
  %v25 = vand.u32 %v24, 127
  %vm26 = vcmp.ge.s32.totalorder %v25, 64
  %vm27 = vcmp.lt.s32.totalorder %v25, 96
  %vm28 = vmand %vm26, %vm27
  %v29 = vsel %vm28, 1.0, 0.5
  %v30 = vsel %vm28, 0.0, 0.5
  %v31 = vld [vmem:[%s0] sm:$0xff]
  %33 = vset.pattern.permute.xlu0 0
  %34 = vperm.xlu0 %33, %v31
  %v35 = vpop.permute.xlu0 %34
  %v38 = vlaneseq
  %v39 = vshrl.u32 %v38, 7
  %v40 = vsub.s32 0, %v39
  %v41 = vrot.slane %v22, %v40
  %v43 = vmul.f32 %v35, %v41
  %v45 = vlaneseq
  %v46 = vshrl.u32 %v45, 7
  %v47 = vsub.s32 0, %v46
  %v48 = vrot.slane %v23, %v47
  %v50 = vadd.f32 %v43, %v48
  %v55 = vunpack.c.l.b16 %v18
  %v56 = vunpack.c.l.b16 %v19
  %v57 = vunpack.c.l.b16 %v20
  %v58 = vunpack.c.l.b16 %v21
  %v59 = vpack.c.b16 %v56, %v55
  %v60 = vpack.c.b16 %v58, %v57
  %vm63 = vcmask 261120
  %v65 = vsel %vm63, 0, 0
  %67 = vmatprep.subr.bf16.mxu0 0
  %68 = vmatpush1.bf16.msra.mxu0 %v59
  %69 = vmatprep.subr.bf16.mxu0 0
  %70 = vmatpush1.bf16.msra.mxu0 %v60
  %71 = vmatprep.subr.bf16.mxu0 0
  %72 = vmatpush1.bf16.msra.mxu0 0
  %73 = vmatprep.subr.bf16.mxu0 0
  %74 = vmatpush1.bf16.msra.mxu0 0
  %75 = vmatprep.subr.bf16.mxu0 0
  %76 = vmatpush1.bf16.msra.mxu0 0
  %77 = vmatprep.subr.bf16.mxu0 0
  %78 = vmatpush1.bf16.msra.mxu0 0
  %79 = vmatprep.subr.bf16.mxu0 0
  %80 = vmatpush1.bf16.msra.mxu0 0
  %81 = vmatprep.subr.bf16.mxu0 0
  %82 = vmatpush1.bf16.msra.mxu0 0
  %83 = vmatprep.subr.bf16.mxu0 0
  %84 = vmatpush1.bf16.msra.mxu0 0
  %85 = vmatprep.subr.bf16.mxu0 0
  %86 = vmatpush1.bf16.msra.mxu0 0
  %87 = vmatprep.subr.bf16.mxu0 0
  %88 = vmatpush1.bf16.msra.mxu0 0
  %89 = vmatprep.subr.bf16.mxu0 0
  %90 = vmatpush1.bf16.msra.mxu0 0
  %91 = vmatprep.subr.bf16.mxu0 0
  %92 = vmatpush1.bf16.msra.mxu0 0
  %93 = vmatprep.subr.bf16.mxu0 0
  %94 = vmatpush1.bf16.msra.mxu0 0
  %95 = vmatprep.subr.bf16.mxu0 0
  %96 = vmatpush1.bf16.msra.mxu0 0
  %97 = vmatprep.subr.bf16.mxu0 0
  %98 = vmatpush1.bf16.msra.mxu0 0
  %99 = vmatprep.mubr.bf16.mxu0 0
  %100 = vmatmul.mubr.bf16.gmra.mrb[0].mxu0 %v65
  %v101 = vpop.f32.mrb[0].mxu0
  %v102 = vadd.f32 0.0, %v101
  %v103 = vpop.f32.mrb[0].mxu0
  %v104 = vpop.f32.mrb[0].mxu0
  %v105 = vpop.f32.mrb[0].mxu0
  %106 = vdwg.mxu0
  %v107 = vadd.f32 %v50, %v102
  %v108 = vmul.f32 %v29, %v107
  %v109 = vtanh.pop %v108
  %v110 = vmul.f32 %v29, %v109
  %v111 = vadd.f32 %v110, %v30
  %v112 = vmul.f32 %v111, 0.0
  %114 = vrot.lane.b32.xlu0 %v111, 64
  %v115 = vpop.permute.xlu0 %114
  %v117 = vmul.f32 %v111, %v115
  %119 = vrot.lane.b32.xlu0 %v117, 32
  %v120 = vpop.permute.xlu0 %119
  %v122 = vadd.f32 %v112, %v120
  %v123 = vtanh.pop %v122
  %125 = vrot.lane.b32.xlu0 %v123, 64
  %v126 = vpop.permute.xlu0 %125
  %v128 = vmul.f32 %v111, %v126
  %130 = vrot.lane.b32.xlu0 %v128, 32
  %v131 = vpop.permute.xlu0 %130
  %133 = vst.msk [vmem:[%s4] sm:$0xff] %vm63, %v131
  %v134 = vld [vmem:[%s0] sm:$0xff]
  %136 = vset.pattern.permute.xlu0 1
  %137 = vperm.xlu0 %136, %v134
  %v138 = vpop.permute.xlu0 %137
  %v140 = vmul.f32 %v138, %v41
  %v141 = vadd.f32 %v140, %v48
  %v142 = vpack.c.bf16 %v128, %v128
  %144 = vrot.lane.b32.xlu0 %v142, 32
  %v145 = vpop.permute.xlu0 %144
  %v147 = vsel %vm63, %v145, 0
  %149 = vmatprep.subr.bf16.mxu0 0
  %150 = vmatpush1.bf16.msra.mxu0 %v59
  %151 = vmatprep.subr.bf16.mxu0 0
  %152 = vmatpush1.bf16.msra.mxu0 %v60
  %153 = vmatprep.subr.bf16.mxu0 0
  %154 = vmatpush1.bf16.msra.mxu0 0
  %155 = vmatprep.subr.bf16.mxu0 0
  %156 = vmatpush1.bf16.msra.mxu0 0
  %157 = vmatprep.subr.bf16.mxu0 0
  %158 = vmatpush1.bf16.msra.mxu0 0
  %159 = vmatprep.subr.bf16.mxu0 0
  %160 = vmatpush1.bf16.msra.mxu0 0
  %161 = vmatprep.subr.bf16.mxu0 0
  %162 = vmatpush1.bf16.msra.mxu0 0
  %163 = vmatprep.subr.bf16.mxu0 0
  %164 = vmatpush1.bf16.msra.mxu0 0
  %165 = vmatprep.subr.bf16.mxu0 0
  %166 = vmatpush1.bf16.msra.mxu0 0
  %167 = vmatprep.subr.bf16.mxu0 0
  %168 = vmatpush1.bf16.msra.mxu0 0
  %169 = vmatprep.subr.bf16.mxu0 0
  %170 = vmatpush1.bf16.msra.mxu0 0
  %171 = vmatprep.subr.bf16.mxu0 0
  %172 = vmatpush1.bf16.msra.mxu0 0
  %173 = vmatprep.subr.bf16.mxu0 0
  %174 = vmatpush1.bf16.msra.mxu0 0
  %175 = vmatprep.subr.bf16.mxu0 0
  %176 = vmatpush1.bf16.msra.mxu0 0
  %177 = vmatprep.subr.bf16.mxu0 0
  %178 = vmatpush1.bf16.msra.mxu0 0
  %179 = vmatprep.subr.bf16.mxu0 0
  %180 = vmatpush1.bf16.msra.mxu0 0
  %181 = vmatprep.mubr.bf16.mxu0 0
  %182 = vmatmul.mubr.bf16.gmra.mrb[0].mxu0 %v147
  %v183 = vpop.f32.mrb[0].mxu0
  %v184 = vadd.f32 0.0, %v183
  %v185 = vpop.f32.mrb[0].mxu0
  %v186 = vpop.f32.mrb[0].mxu0
  %v187 = vpop.f32.mrb[0].mxu0
  %188 = vdwg.mxu0
  %v189 = vadd.f32 %v141, %v184
  %v190 = vmul.f32 %v29, %v189
  %v191 = vtanh.pop %v190
  %v192 = vmul.f32 %v29, %v191
  %v193 = vadd.f32 %v192, %v30
  %v194 = vmul.f32 %v193, %v122
  %196 = vrot.lane.b32.xlu0 %v193, 64
  %v197 = vpop.permute.xlu0 %196
  %v199 = vmul.f32 %v193, %v197
  %201 = vrot.lane.b32.xlu0 %v199, 32
  %v202 = vpop.permute.xlu0 %201
  %v204 = vadd.f32 %v194, %v202
  %v205 = vtanh.pop %v204
  %207 = vrot.lane.b32.xlu0 %v205, 64
  %v208 = vpop.permute.xlu0 %207
  %v210 = vmul.f32 %v193, %v208
  %212 = vrot.lane.b32.xlu0 %v210, 64
  %v213 = vpop.permute.xlu0 %212
  %vm215 = vcmask 523520
  %216 = vst.msk [vmem:[%s4] sm:$0xff] %vm215, %v213
  %v217 = vld [vmem:[%s0] sm:$0xff]
  %219 = vset.pattern.permute.xlu0 2
  %220 = vperm.xlu0 %219, %v217
  %v221 = vpop.permute.xlu0 %220
  %v223 = vmul.f32 %v221, %v41
  %v224 = vadd.f32 %v223, %v48
  %v225 = vpack.c.bf16 %v210, %v210
  %227 = vrot.lane.b32.xlu0 %v225, 32
  %v228 = vpop.permute.xlu0 %227
  %v230 = vsel %vm63, %v228, 0
  %232 = vmatprep.subr.bf16.mxu0 0
  %233 = vmatpush1.bf16.msra.mxu0 %v59
  %234 = vmatprep.subr.bf16.mxu0 0
  %235 = vmatpush1.bf16.msra.mxu0 %v60
  %236 = vmatprep.subr.bf16.mxu0 0
  %237 = vmatpush1.bf16.msra.mxu0 0
  %238 = vmatprep.subr.bf16.mxu0 0
  %239 = vmatpush1.bf16.msra.mxu0 0
  %240 = vmatprep.subr.bf16.mxu0 0
  %241 = vmatpush1.bf16.msra.mxu0 0
  %242 = vmatprep.subr.bf16.mxu0 0
  %243 = vmatpush1.bf16.msra.mxu0 0
  %244 = vmatprep.subr.bf16.mxu0 0
  %245 = vmatpush1.bf16.msra.mxu0 0
  %246 = vmatprep.subr.bf16.mxu0 0
  %247 = vmatpush1.bf16.msra.mxu0 0
  %248 = vmatprep.subr.bf16.mxu0 0
  %249 = vmatpush1.bf16.msra.mxu0 0
  %250 = vmatprep.subr.bf16.mxu0 0
  %251 = vmatpush1.bf16.msra.mxu0 0
  %252 = vmatprep.subr.bf16.mxu0 0
  %253 = vmatpush1.bf16.msra.mxu0 0
  %254 = vmatprep.subr.bf16.mxu0 0
  %255 = vmatpush1.bf16.msra.mxu0 0
  %256 = vmatprep.subr.bf16.mxu0 0
  %257 = vmatpush1.bf16.msra.mxu0 0
  %258 = vmatprep.subr.bf16.mxu0 0
  %259 = vmatpush1.bf16.msra.mxu0 0
  %260 = vmatprep.subr.bf16.mxu0 0
  %261 = vmatpush1.bf16.msra.mxu0 0
  %262 = vmatprep.subr.bf16.mxu0 0
  %263 = vmatpush1.bf16.msra.mxu0 0
  %264 = vmatprep.mubr.bf16.mxu0 0
  %265 = vmatmul.mubr.bf16.gmra.mrb[0].mxu0 %v230
  %v266 = vpop.f32.mrb[0].mxu0
  %v267 = vadd.f32 0.0, %v266
  %v268 = vpop.f32.mrb[0].mxu0
  %v269 = vpop.f32.mrb[0].mxu0
  %v270 = vpop.f32.mrb[0].mxu0
  %271 = vdwg.mxu0
  %v272 = vadd.f32 %v224, %v267
  %v273 = vmul.f32 %v29, %v272
  %v274 = vtanh.pop %v273
  %v275 = vmul.f32 %v29, %v274
  %v276 = vadd.f32 %v275, %v30
  %v277 = vmul.f32 %v276, %v204
  %279 = vrot.lane.b32.xlu0 %v276, 64
  %v280 = vpop.permute.xlu0 %279
  %v282 = vmul.f32 %v276, %v280
  %284 = vrot.lane.b32.xlu0 %v282, 32
  %v285 = vpop.permute.xlu0 %284
  %v287 = vadd.f32 %v277, %v285
  %v288 = vtanh.pop %v287
  %290 = vrot.lane.b32.xlu0 %v288, 64
  %v291 = vpop.permute.xlu0 %290
  %v293 = vmul.f32 %v276, %v291
  %295 = vrot.lane.b32.xlu0 %v293, 96
  %v296 = vpop.permute.xlu0 %295
  %vm298 = vcmask 785920
  %299 = vst.msk [vmem:[%s4] sm:$0xff] %vm298, %v296
  %v300 = vld [vmem:[%s0] sm:$0xff]
  %302 = vset.pattern.permute.xlu0 3
  %303 = vperm.xlu0 %302, %v300
  %v304 = vpop.permute.xlu0 %303
  %v306 = vmul.f32 %v304, %v41
  %v307 = vadd.f32 %v306, %v48
  %v308 = vpack.c.bf16 %v293, %v293
  %310 = vrot.lane.b32.xlu0 %v308, 32
  %v311 = vpop.permute.xlu0 %310
  %v313 = vsel %vm63, %v311, 0
  %315 = vmatprep.subr.bf16.mxu0 0
  %316 = vmatpush1.bf16.msra.mxu0 %v59
  %317 = vmatprep.subr.bf16.mxu0 0
  %318 = vmatpush1.bf16.msra.mxu0 %v60
  %319 = vmatprep.subr.bf16.mxu0 0
  %320 = vmatpush1.bf16.msra.mxu0 0
  %321 = vmatprep.subr.bf16.mxu0 0
  %322 = vmatpush1.bf16.msra.mxu0 0
  %323 = vmatprep.subr.bf16.mxu0 0
  %324 = vmatpush1.bf16.msra.mxu0 0
  %325 = vmatprep.subr.bf16.mxu0 0
  %326 = vmatpush1.bf16.msra.mxu0 0
  %327 = vmatprep.subr.bf16.mxu0 0
  %328 = vmatpush1.bf16.msra.mxu0 0
  %329 = vmatprep.subr.bf16.mxu0 0
  %330 = vmatpush1.bf16.msra.mxu0 0
  %331 = vmatprep.subr.bf16.mxu0 0
  %332 = vmatpush1.bf16.msra.mxu0 0
  %333 = vmatprep.subr.bf16.mxu0 0
  %334 = vmatpush1.bf16.msra.mxu0 0
  %335 = vmatprep.subr.bf16.mxu0 0
  %336 = vmatpush1.bf16.msra.mxu0 0
  %337 = vmatprep.subr.bf16.mxu0 0
  %338 = vmatpush1.bf16.msra.mxu0 0
  %339 = vmatprep.subr.bf16.mxu0 0
  %340 = vmatpush1.bf16.msra.mxu0 0
  %341 = vmatprep.subr.bf16.mxu0 0
  %342 = vmatpush1.bf16.msra.mxu0 0
  %343 = vmatprep.subr.bf16.mxu0 0
  %344 = vmatpush1.bf16.msra.mxu0 0
  %345 = vmatprep.subr.bf16.mxu0 0
  %346 = vmatpush1.bf16.msra.mxu0 0
  %347 = vmatprep.mubr.bf16.mxu0 0
  %348 = vmatmul.mubr.bf16.gmra.mrb[0].mxu0 %v313
  %v349 = vpop.f32.mrb[0].mxu0
  %v350 = vadd.f32 0.0, %v349
  %v351 = vpop.f32.mrb[0].mxu0
  %v352 = vpop.f32.mrb[0].mxu0
  %v353 = vpop.f32.mrb[0].mxu0
  %354 = vdwg.mxu0
  %v355 = vadd.f32 %v307, %v350
  %v356 = vmul.f32 %v29, %v355
  %v357 = vtanh.pop %v356
  %v358 = vmul.f32 %v29, %v357
  %v359 = vadd.f32 %v358, %v30
  %v360 = vmul.f32 %v359, %v287
  %362 = vrot.lane.b32.xlu0 %v359, 64
  %v363 = vpop.permute.xlu0 %362
  %v365 = vmul.f32 %v359, %v363
  %367 = vrot.lane.b32.xlu0 %v365, 32
  %v368 = vpop.permute.xlu0 %367
  %v370 = vadd.f32 %v360, %v368
  %v371 = vtanh.pop %v370
  %373 = vrot.lane.b32.xlu0 %v371, 64
  %v374 = vpop.permute.xlu0 %373
  %v376 = vmul.f32 %v359, %v374
  %vm377 = vcmask 1048320
  %378 = vst.msk [vmem:[%s4] sm:$0xff] %vm377, %v376
  %v379 = vld [vmem:[%s0] sm:$0xff]
  %381 = vset.pattern.permute.xlu0 4
  %382 = vperm.xlu0 %381, %v379
  %v383 = vpop.permute.xlu0 %382
  %v385 = vmul.f32 %v383, %v41
  %v386 = vadd.f32 %v385, %v48
  %v387 = vpack.c.bf16 %v376, %v376
  %389 = vrot.lane.b32.xlu0 %v387, 32
  %v390 = vpop.permute.xlu0 %389
  %v392 = vsel %vm63, %v390, 0
  %394 = vmatprep.subr.bf16.mxu0 0
  %395 = vmatpush1.bf16.msra.mxu0 %v59
  %396 = vmatprep.subr.bf16.mxu0 0
  %397 = vmatpush1.bf16.msra.mxu0 %v60
  %398 = vmatprep.subr.bf16.mxu0 0
  %399 = vmatpush1.bf16.msra.mxu0 0
  %400 = vmatprep.subr.bf16.mxu0 0
  %401 = vmatpush1.bf16.msra.mxu0 0
  %402 = vmatprep.subr.bf16.mxu0 0
  %403 = vmatpush1.bf16.msra.mxu0 0
  %404 = vmatprep.subr.bf16.mxu0 0
  %405 = vmatpush1.bf16.msra.mxu0 0
  %406 = vmatprep.subr.bf16.mxu0 0
  %407 = vmatpush1.bf16.msra.mxu0 0
  %408 = vmatprep.subr.bf16.mxu0 0
  %409 = vmatpush1.bf16.msra.mxu0 0
  %410 = vmatprep.subr.bf16.mxu0 0
  %411 = vmatpush1.bf16.msra.mxu0 0
  %412 = vmatprep.subr.bf16.mxu0 0
  %413 = vmatpush1.bf16.msra.mxu0 0
  %414 = vmatprep.subr.bf16.mxu0 0
  %415 = vmatpush1.bf16.msra.mxu0 0
  %416 = vmatprep.subr.bf16.mxu0 0
  %417 = vmatpush1.bf16.msra.mxu0 0
  %418 = vmatprep.subr.bf16.mxu0 0
  %419 = vmatpush1.bf16.msra.mxu0 0
  %420 = vmatprep.subr.bf16.mxu0 0
  %421 = vmatpush1.bf16.msra.mxu0 0
  %422 = vmatprep.subr.bf16.mxu0 0
  %423 = vmatpush1.bf16.msra.mxu0 0
  %424 = vmatprep.subr.bf16.mxu0 0
  %425 = vmatpush1.bf16.msra.mxu0 0
  %426 = vmatprep.mubr.bf16.mxu0 0
  %427 = vmatmul.mubr.bf16.gmra.mrb[0].mxu0 %v392
  %v428 = vpop.f32.mrb[0].mxu0
  %v429 = vadd.f32 0.0, %v428
  %v430 = vpop.f32.mrb[0].mxu0
  %v431 = vpop.f32.mrb[0].mxu0
  %v432 = vpop.f32.mrb[0].mxu0
  %433 = vdwg.mxu0
  %v434 = vadd.f32 %v386, %v429
  %v435 = vmul.f32 %v29, %v434
  %v436 = vtanh.pop %v435
  %v437 = vmul.f32 %v29, %v436
  %v438 = vadd.f32 %v437, %v30
  %v439 = vmul.f32 %v438, %v370
  %441 = vrot.lane.b32.xlu0 %v438, 64
  %v442 = vpop.permute.xlu0 %441
  %v444 = vmul.f32 %v438, %v442
  %446 = vrot.lane.b32.xlu0 %v444, 32
  %v447 = vpop.permute.xlu0 %446
  %v449 = vadd.f32 %v439, %v447
  %v450 = vtanh.pop %v449
  %452 = vrot.lane.b32.xlu0 %v450, 64
  %v453 = vpop.permute.xlu0 %452
  %v455 = vmul.f32 %v438, %v453
  %457 = vrot.lane.b32.xlu0 %v455, 32
  %v458 = vpop.permute.xlu0 %457
  %460 = vst.msk [vmem:[%s4 + $0x8] sm:$0xff] %vm63, %v458
  %v461 = vld [vmem:[%s0] sm:$0xff]
  %463 = vset.pattern.permute.xlu0 5
  %464 = vperm.xlu0 %463, %v461
  %v465 = vpop.permute.xlu0 %464
  %v467 = vmul.f32 %v465, %v41
  %v468 = vadd.f32 %v467, %v48
  %v469 = vpack.c.bf16 %v455, %v455
  %471 = vrot.lane.b32.xlu0 %v469, 32
  %v472 = vpop.permute.xlu0 %471
  %v474 = vsel %vm63, %v472, 0
  %476 = vmatprep.subr.bf16.mxu0 0
  %477 = vmatpush1.bf16.msra.mxu0 %v59
  %478 = vmatprep.subr.bf16.mxu0 0
  %479 = vmatpush1.bf16.msra.mxu0 %v60
  %480 = vmatprep.subr.bf16.mxu0 0
  %481 = vmatpush1.bf16.msra.mxu0 0
  %482 = vmatprep.subr.bf16.mxu0 0
  %483 = vmatpush1.bf16.msra.mxu0 0
  %484 = vmatprep.subr.bf16.mxu0 0
  %485 = vmatpush1.bf16.msra.mxu0 0
  %486 = vmatprep.subr.bf16.mxu0 0
  %487 = vmatpush1.bf16.msra.mxu0 0
  %488 = vmatprep.subr.bf16.mxu0 0
  %489 = vmatpush1.bf16.msra.mxu0 0
  %490 = vmatprep.subr.bf16.mxu0 0
  %491 = vmatpush1.bf16.msra.mxu0 0
  %492 = vmatprep.subr.bf16.mxu0 0
  %493 = vmatpush1.bf16.msra.mxu0 0
  %494 = vmatprep.subr.bf16.mxu0 0
  %495 = vmatpush1.bf16.msra.mxu0 0
  %496 = vmatprep.subr.bf16.mxu0 0
  %497 = vmatpush1.bf16.msra.mxu0 0
  %498 = vmatprep.subr.bf16.mxu0 0
  %499 = vmatpush1.bf16.msra.mxu0 0
  %500 = vmatprep.subr.bf16.mxu0 0
  %501 = vmatpush1.bf16.msra.mxu0 0
  %502 = vmatprep.subr.bf16.mxu0 0
  %503 = vmatpush1.bf16.msra.mxu0 0
  %504 = vmatprep.subr.bf16.mxu0 0
  %505 = vmatpush1.bf16.msra.mxu0 0
  %506 = vmatprep.subr.bf16.mxu0 0
  %507 = vmatpush1.bf16.msra.mxu0 0
  %508 = vmatprep.mubr.bf16.mxu0 0
  %509 = vmatmul.mubr.bf16.gmra.mrb[0].mxu0 %v474
  %v510 = vpop.f32.mrb[0].mxu0
  %v511 = vadd.f32 0.0, %v510
  %v512 = vpop.f32.mrb[0].mxu0
  %v513 = vpop.f32.mrb[0].mxu0
  %v514 = vpop.f32.mrb[0].mxu0
  %515 = vdwg.mxu0
  %v516 = vadd.f32 %v468, %v511
  %v517 = vmul.f32 %v29, %v516
  %v518 = vtanh.pop %v517
  %v519 = vmul.f32 %v29, %v518
  %v520 = vadd.f32 %v519, %v30
  %v521 = vmul.f32 %v520, %v449
  %523 = vrot.lane.b32.xlu0 %v520, 64
  %v524 = vpop.permute.xlu0 %523
  %v526 = vmul.f32 %v520, %v524
  %528 = vrot.lane.b32.xlu0 %v526, 32
  %v529 = vpop.permute.xlu0 %528
  %v531 = vadd.f32 %v521, %v529
  %v532 = vtanh.pop %v531
  %534 = vrot.lane.b32.xlu0 %v532, 64
  %v535 = vpop.permute.xlu0 %534
  %v537 = vmul.f32 %v520, %v535
  %539 = vrot.lane.b32.xlu0 %v537, 64
  %v540 = vpop.permute.xlu0 %539
  %542 = vst.msk [vmem:[%s4 + $0x8] sm:$0xff] %vm215, %v540
  %v543 = vld [vmem:[%s0] sm:$0xff]
  %545 = vset.pattern.permute.xlu0 6
  %546 = vperm.xlu0 %545, %v543
  %v547 = vpop.permute.xlu0 %546
  %v549 = vmul.f32 %v547, %v41
  %v550 = vadd.f32 %v549, %v48
  %v551 = vpack.c.bf16 %v537, %v537
  %553 = vrot.lane.b32.xlu0 %v551, 32
  %v554 = vpop.permute.xlu0 %553
  %v556 = vsel %vm63, %v554, 0
  %558 = vmatprep.subr.bf16.mxu0 0
  %559 = vmatpush1.bf16.msra.mxu0 %v59
  %560 = vmatprep.subr.bf16.mxu0 0
  %561 = vmatpush1.bf16.msra.mxu0 %v60
  %562 = vmatprep.subr.bf16.mxu0 0
  %563 = vmatpush1.bf16.msra.mxu0 0
  %564 = vmatprep.subr.bf16.mxu0 0
  %565 = vmatpush1.bf16.msra.mxu0 0
  %566 = vmatprep.subr.bf16.mxu0 0
  %567 = vmatpush1.bf16.msra.mxu0 0
  %568 = vmatprep.subr.bf16.mxu0 0
  %569 = vmatpush1.bf16.msra.mxu0 0
  %570 = vmatprep.subr.bf16.mxu0 0
  %571 = vmatpush1.bf16.msra.mxu0 0
  %572 = vmatprep.subr.bf16.mxu0 0
  %573 = vmatpush1.bf16.msra.mxu0 0
  %574 = vmatprep.subr.bf16.mxu0 0
  %575 = vmatpush1.bf16.msra.mxu0 0
  %576 = vmatprep.subr.bf16.mxu0 0
  %577 = vmatpush1.bf16.msra.mxu0 0
  %578 = vmatprep.subr.bf16.mxu0 0
  %579 = vmatpush1.bf16.msra.mxu0 0
  %580 = vmatprep.subr.bf16.mxu0 0
  %581 = vmatpush1.bf16.msra.mxu0 0
  %582 = vmatprep.subr.bf16.mxu0 0
  %583 = vmatpush1.bf16.msra.mxu0 0
  %584 = vmatprep.subr.bf16.mxu0 0
  %585 = vmatpush1.bf16.msra.mxu0 0
  %586 = vmatprep.subr.bf16.mxu0 0
  %587 = vmatpush1.bf16.msra.mxu0 0
  %588 = vmatprep.subr.bf16.mxu0 0
  %589 = vmatpush1.bf16.msra.mxu0 0
  %590 = vmatprep.mubr.bf16.mxu0 0
  %591 = vmatmul.mubr.bf16.gmra.mrb[0].mxu0 %v556
  %v592 = vpop.f32.mrb[0].mxu0
  %v593 = vadd.f32 0.0, %v592
  %v594 = vpop.f32.mrb[0].mxu0
  %v595 = vpop.f32.mrb[0].mxu0
  %v596 = vpop.f32.mrb[0].mxu0
  %597 = vdwg.mxu0
  %v598 = vadd.f32 %v550, %v593
  %v599 = vmul.f32 %v29, %v598
  %v600 = vtanh.pop %v599
  %v601 = vmul.f32 %v29, %v600
  %v602 = vadd.f32 %v601, %v30
  %v603 = vmul.f32 %v602, %v531
  %605 = vrot.lane.b32.xlu0 %v602, 64
  %v606 = vpop.permute.xlu0 %605
  %v608 = vmul.f32 %v602, %v606
  %610 = vrot.lane.b32.xlu0 %v608, 32
  %v611 = vpop.permute.xlu0 %610
  %v613 = vadd.f32 %v603, %v611
  %v614 = vtanh.pop %v613
  %616 = vrot.lane.b32.xlu0 %v614, 64
  %v617 = vpop.permute.xlu0 %616
  %v619 = vmul.f32 %v602, %v617
  %621 = vrot.lane.b32.xlu0 %v619, 96
  %v622 = vpop.permute.xlu0 %621
  %624 = vst.msk [vmem:[%s4 + $0x8] sm:$0xff] %vm298, %v622
  %v625 = vld [vmem:[%s0] sm:$0xff]
  %627 = vset.pattern.permute.xlu0 7
  %628 = vperm.xlu0 %627, %v625
  %v629 = vpop.permute.xlu0 %628
  %v631 = vmul.f32 %v629, %v41
  %v632 = vadd.f32 %v631, %v48
  %v633 = vpack.c.bf16 %v619, %v619
  %635 = vrot.lane.b32.xlu0 %v633, 32
  %v636 = vpop.permute.xlu0 %635
  %v638 = vsel %vm63, %v636, 0
  %640 = vmatprep.subr.bf16.mxu0 0
  %641 = vmatpush1.bf16.msra.mxu0 %v59
  %642 = vmatprep.subr.bf16.mxu0 0
  %643 = vmatpush1.bf16.msra.mxu0 %v60
  %644 = vmatprep.subr.bf16.mxu0 0
  %645 = vmatpush1.bf16.msra.mxu0 0
  %646 = vmatprep.subr.bf16.mxu0 0
  %647 = vmatpush1.bf16.msra.mxu0 0
  %648 = vmatprep.subr.bf16.mxu0 0
  %649 = vmatpush1.bf16.msra.mxu0 0
  %650 = vmatprep.subr.bf16.mxu0 0
  %651 = vmatpush1.bf16.msra.mxu0 0
  %652 = vmatprep.subr.bf16.mxu0 0
  %653 = vmatpush1.bf16.msra.mxu0 0
  %654 = vmatprep.subr.bf16.mxu0 0
  %655 = vmatpush1.bf16.msra.mxu0 0
  %656 = vmatprep.subr.bf16.mxu0 0
  %657 = vmatpush1.bf16.msra.mxu0 0
  %658 = vmatprep.subr.bf16.mxu0 0
  %659 = vmatpush1.bf16.msra.mxu0 0
  %660 = vmatprep.subr.bf16.mxu0 0
  %661 = vmatpush1.bf16.msra.mxu0 0
  %662 = vmatprep.subr.bf16.mxu0 0
  %663 = vmatpush1.bf16.msra.mxu0 0
  %664 = vmatprep.subr.bf16.mxu0 0
  %665 = vmatpush1.bf16.msra.mxu0 0
  %666 = vmatprep.subr.bf16.mxu0 0
  %667 = vmatpush1.bf16.msra.mxu0 0
  %668 = vmatprep.subr.bf16.mxu0 0
  %669 = vmatpush1.bf16.msra.mxu0 0
  %670 = vmatprep.subr.bf16.mxu0 0
  %671 = vmatpush1.bf16.msra.mxu0 0
  %672 = vmatprep.mubr.bf16.mxu0 0
  %673 = vmatmul.mubr.bf16.gmra.mrb[0].mxu0 %v638
  %v674 = vpop.f32.mrb[0].mxu0
  %v675 = vadd.f32 0.0, %v674
  %v676 = vpop.f32.mrb[0].mxu0
  %v677 = vpop.f32.mrb[0].mxu0
  %v678 = vpop.f32.mrb[0].mxu0
  %679 = vdwg.mxu0
  %v680 = vadd.f32 %v632, %v675
  %v681 = vmul.f32 %v29, %v680
  %v682 = vtanh.pop %v681
  %v683 = vmul.f32 %v29, %v682
  %v684 = vadd.f32 %v683, %v30
  %v685 = vmul.f32 %v684, %v613
  %687 = vrot.lane.b32.xlu0 %v684, 64
  %v688 = vpop.permute.xlu0 %687
  %v690 = vmul.f32 %v684, %v688
  %692 = vrot.lane.b32.xlu0 %v690, 32
  %v693 = vpop.permute.xlu0 %692
  %v695 = vadd.f32 %v685, %v693
  %v696 = vtanh.pop %v695
  %698 = vrot.lane.b32.xlu0 %v696, 64
  %v699 = vpop.permute.xlu0 %698
  %v701 = vmul.f32 %v684, %v699
  %702 = vst.msk [vmem:[%s4 + $0x8] sm:$0xff] %vm377, %v701
  %v703 = vld [vmem:[%s0] sm:$0xff]
  %705 = vset.pattern.permute.xlu0 8
  %706 = vperm.xlu0 %705, %v703
  %v707 = vpop.permute.xlu0 %706
  %v709 = vmul.f32 %v707, %v41
  %v710 = vadd.f32 %v709, %v48
  %v711 = vpack.c.bf16 %v701, %v701
  %713 = vrot.lane.b32.xlu0 %v711, 32
  %v714 = vpop.permute.xlu0 %713
  %v716 = vsel %vm63, %v714, 0
  %718 = vmatprep.subr.bf16.mxu0 0
  %719 = vmatpush1.bf16.msra.mxu0 %v59
  %720 = vmatprep.subr.bf16.mxu0 0
  %721 = vmatpush1.bf16.msra.mxu0 %v60
  %722 = vmatprep.subr.bf16.mxu0 0
  %723 = vmatpush1.bf16.msra.mxu0 0
  %724 = vmatprep.subr.bf16.mxu0 0
  %725 = vmatpush1.bf16.msra.mxu0 0
  %726 = vmatprep.subr.bf16.mxu0 0
  %727 = vmatpush1.bf16.msra.mxu0 0
  %728 = vmatprep.subr.bf16.mxu0 0
  %729 = vmatpush1.bf16.msra.mxu0 0
  %730 = vmatprep.subr.bf16.mxu0 0
  %731 = vmatpush1.bf16.msra.mxu0 0
  %732 = vmatprep.subr.bf16.mxu0 0
  %733 = vmatpush1.bf16.msra.mxu0 0
  %734 = vmatprep.subr.bf16.mxu0 0
  %735 = vmatpush1.bf16.msra.mxu0 0
  %736 = vmatprep.subr.bf16.mxu0 0
  %737 = vmatpush1.bf16.msra.mxu0 0
  %738 = vmatprep.subr.bf16.mxu0 0
  %739 = vmatpush1.bf16.msra.mxu0 0
  %740 = vmatprep.subr.bf16.mxu0 0
  %741 = vmatpush1.bf16.msra.mxu0 0
  %742 = vmatprep.subr.bf16.mxu0 0
  %743 = vmatpush1.bf16.msra.mxu0 0
  %744 = vmatprep.subr.bf16.mxu0 0
  %745 = vmatpush1.bf16.msra.mxu0 0
  %746 = vmatprep.subr.bf16.mxu0 0
  %747 = vmatpush1.bf16.msra.mxu0 0
  %748 = vmatprep.subr.bf16.mxu0 0
  %749 = vmatpush1.bf16.msra.mxu0 0
  %750 = vmatprep.mubr.bf16.mxu0 0
  %751 = vmatmul.mubr.bf16.gmra.mrb[0].mxu0 %v716
  %v752 = vpop.f32.mrb[0].mxu0
  %v753 = vadd.f32 0.0, %v752
  %v754 = vpop.f32.mrb[0].mxu0
  %v755 = vpop.f32.mrb[0].mxu0
  %v756 = vpop.f32.mrb[0].mxu0
  %757 = vdwg.mxu0
  %v758 = vadd.f32 %v710, %v753
  %v759 = vmul.f32 %v29, %v758
  %v760 = vtanh.pop %v759
  %v761 = vmul.f32 %v29, %v760
  %v762 = vadd.f32 %v761, %v30
  %v763 = vmul.f32 %v762, %v695
  %765 = vrot.lane.b32.xlu0 %v762, 64
  %v766 = vpop.permute.xlu0 %765
  %v768 = vmul.f32 %v762, %v766
  %770 = vrot.lane.b32.xlu0 %v768, 32
  %v771 = vpop.permute.xlu0 %770
  %v773 = vadd.f32 %v763, %v771
  %v774 = vtanh.pop %v773
  %776 = vrot.lane.b32.xlu0 %v774, 64
  %v777 = vpop.permute.xlu0 %776
  %v779 = vmul.f32 %v762, %v777
  %781 = vrot.lane.b32.xlu0 %v779, 32
  %v782 = vpop.permute.xlu0 %781
  %784 = vst.msk [vmem:[%s4 + $0x10] sm:$0xff] %vm63, %v782
  %v785 = vld [vmem:[%s0] sm:$0xff]
  %787 = vset.pattern.permute.xlu0 9
  %788 = vperm.xlu0 %787, %v785
  %v789 = vpop.permute.xlu0 %788
  %v791 = vmul.f32 %v789, %v41
  %v792 = vadd.f32 %v791, %v48
  %v793 = vpack.c.bf16 %v779, %v779
  %795 = vrot.lane.b32.xlu0 %v793, 32
  %v796 = vpop.permute.xlu0 %795
  %v798 = vsel %vm63, %v796, 0
  %800 = vmatprep.subr.bf16.mxu0 0
  %801 = vmatpush1.bf16.msra.mxu0 %v59
  %802 = vmatprep.subr.bf16.mxu0 0
  %803 = vmatpush1.bf16.msra.mxu0 %v60
  %804 = vmatprep.subr.bf16.mxu0 0
  %805 = vmatpush1.bf16.msra.mxu0 0
  %806 = vmatprep.subr.bf16.mxu0 0
  %807 = vmatpush1.bf16.msra.mxu0 0
  %808 = vmatprep.subr.bf16.mxu0 0
  %809 = vmatpush1.bf16.msra.mxu0 0
  %810 = vmatprep.subr.bf16.mxu0 0
  %811 = vmatpush1.bf16.msra.mxu0 0
  %812 = vmatprep.subr.bf16.mxu0 0
  %813 = vmatpush1.bf16.msra.mxu0 0
  %814 = vmatprep.subr.bf16.mxu0 0
  %815 = vmatpush1.bf16.msra.mxu0 0
  %816 = vmatprep.subr.bf16.mxu0 0
  %817 = vmatpush1.bf16.msra.mxu0 0
  %818 = vmatprep.subr.bf16.mxu0 0
  %819 = vmatpush1.bf16.msra.mxu0 0
  %820 = vmatprep.subr.bf16.mxu0 0
  %821 = vmatpush1.bf16.msra.mxu0 0
  %822 = vmatprep.subr.bf16.mxu0 0
  %823 = vmatpush1.bf16.msra.mxu0 0
  %824 = vmatprep.subr.bf16.mxu0 0
  %825 = vmatpush1.bf16.msra.mxu0 0
  %826 = vmatprep.subr.bf16.mxu0 0
  %827 = vmatpush1.bf16.msra.mxu0 0
  %828 = vmatprep.subr.bf16.mxu0 0
  %829 = vmatpush1.bf16.msra.mxu0 0
  %830 = vmatprep.subr.bf16.mxu0 0
  %831 = vmatpush1.bf16.msra.mxu0 0
  %832 = vmatprep.mubr.bf16.mxu0 0
  %833 = vmatmul.mubr.bf16.gmra.mrb[0].mxu0 %v798
  %v834 = vpop.f32.mrb[0].mxu0
  %v835 = vadd.f32 0.0, %v834
  %v836 = vpop.f32.mrb[0].mxu0
  %v837 = vpop.f32.mrb[0].mxu0
  %v838 = vpop.f32.mrb[0].mxu0
  %839 = vdwg.mxu0
  %v840 = vadd.f32 %v792, %v835
  %v841 = vmul.f32 %v29, %v840
  %v842 = vtanh.pop %v841
  %v843 = vmul.f32 %v29, %v842
  %v844 = vadd.f32 %v843, %v30
  %v845 = vmul.f32 %v844, %v773
  %847 = vrot.lane.b32.xlu0 %v844, 64
  %v848 = vpop.permute.xlu0 %847
  %v850 = vmul.f32 %v844, %v848
  %852 = vrot.lane.b32.xlu0 %v850, 32
  %v853 = vpop.permute.xlu0 %852
  %v855 = vadd.f32 %v845, %v853
  %v856 = vtanh.pop %v855
  %858 = vrot.lane.b32.xlu0 %v856, 64
  %v859 = vpop.permute.xlu0 %858
  %v861 = vmul.f32 %v844, %v859
  %863 = vrot.lane.b32.xlu0 %v861, 64
  %v864 = vpop.permute.xlu0 %863
  %866 = vst.msk [vmem:[%s4 + $0x10] sm:$0xff] %vm215, %v864
  %v867 = vld [vmem:[%s0] sm:$0xff]
  %869 = vset.pattern.permute.xlu0 10
  %870 = vperm.xlu0 %869, %v867
  %v871 = vpop.permute.xlu0 %870
  %v873 = vmul.f32 %v871, %v41
  %v874 = vadd.f32 %v873, %v48
  %v875 = vpack.c.bf16 %v861, %v861
  %877 = vrot.lane.b32.xlu0 %v875, 32
  %v878 = vpop.permute.xlu0 %877
  %v880 = vsel %vm63, %v878, 0
  %882 = vmatprep.subr.bf16.mxu0 0
  %883 = vmatpush1.bf16.msra.mxu0 %v59
  %884 = vmatprep.subr.bf16.mxu0 0
  %885 = vmatpush1.bf16.msra.mxu0 %v60
  %886 = vmatprep.subr.bf16.mxu0 0
  %887 = vmatpush1.bf16.msra.mxu0 0
  %888 = vmatprep.subr.bf16.mxu0 0
  %889 = vmatpush1.bf16.msra.mxu0 0
  %890 = vmatprep.subr.bf16.mxu0 0
  %891 = vmatpush1.bf16.msra.mxu0 0
  %892 = vmatprep.subr.bf16.mxu0 0
  %893 = vmatpush1.bf16.msra.mxu0 0
  %894 = vmatprep.subr.bf16.mxu0 0
  %895 = vmatpush1.bf16.msra.mxu0 0
  %896 = vmatprep.subr.bf16.mxu0 0
  %897 = vmatpush1.bf16.msra.mxu0 0
  %898 = vmatprep.subr.bf16.mxu0 0
  %899 = vmatpush1.bf16.msra.mxu0 0
  %900 = vmatprep.subr.bf16.mxu0 0
  %901 = vmatpush1.bf16.msra.mxu0 0
  %902 = vmatprep.subr.bf16.mxu0 0
  %903 = vmatpush1.bf16.msra.mxu0 0
  %904 = vmatprep.subr.bf16.mxu0 0
  %905 = vmatpush1.bf16.msra.mxu0 0
  %906 = vmatprep.subr.bf16.mxu0 0
  %907 = vmatpush1.bf16.msra.mxu0 0
  %908 = vmatprep.subr.bf16.mxu0 0
  %909 = vmatpush1.bf16.msra.mxu0 0
  %910 = vmatprep.subr.bf16.mxu0 0
  %911 = vmatpush1.bf16.msra.mxu0 0
  %912 = vmatprep.subr.bf16.mxu0 0
  %913 = vmatpush1.bf16.msra.mxu0 0
  %914 = vmatprep.mubr.bf16.mxu0 0
  %915 = vmatmul.mubr.bf16.gmra.mrb[0].mxu0 %v880
  %v916 = vpop.f32.mrb[0].mxu0
  %v917 = vadd.f32 0.0, %v916
  %v918 = vpop.f32.mrb[0].mxu0
  %v919 = vpop.f32.mrb[0].mxu0
  %v920 = vpop.f32.mrb[0].mxu0
  %921 = vdwg.mxu0
  %v922 = vadd.f32 %v874, %v917
  %v923 = vmul.f32 %v29, %v922
  %v924 = vtanh.pop %v923
  %v925 = vmul.f32 %v29, %v924
  %v926 = vadd.f32 %v925, %v30
  %v927 = vmul.f32 %v926, %v855
  %929 = vrot.lane.b32.xlu0 %v926, 64
  %v930 = vpop.permute.xlu0 %929
  %v932 = vmul.f32 %v926, %v930
  %934 = vrot.lane.b32.xlu0 %v932, 32
  %v935 = vpop.permute.xlu0 %934
  %v937 = vadd.f32 %v927, %v935
  %v938 = vtanh.pop %v937
  %940 = vrot.lane.b32.xlu0 %v938, 64
  %v941 = vpop.permute.xlu0 %940
  %v943 = vmul.f32 %v926, %v941
  %945 = vrot.lane.b32.xlu0 %v943, 96
  %v946 = vpop.permute.xlu0 %945
  %948 = vst.msk [vmem:[%s4 + $0x10] sm:$0xff] %vm298, %v946
  %v949 = vld [vmem:[%s0] sm:$0xff]
  %951 = vset.pattern.permute.xlu0 11
  %952 = vperm.xlu0 %951, %v949
  %v953 = vpop.permute.xlu0 %952
  %v955 = vmul.f32 %v953, %v41
  %v956 = vadd.f32 %v955, %v48
  %v957 = vpack.c.bf16 %v943, %v943
  %959 = vrot.lane.b32.xlu0 %v957, 32
  %v960 = vpop.permute.xlu0 %959
  %v962 = vsel %vm63, %v960, 0
  %964 = vmatprep.subr.bf16.mxu0 0
  %965 = vmatpush1.bf16.msra.mxu0 %v59
  %966 = vmatprep.subr.bf16.mxu0 0
  %967 = vmatpush1.bf16.msra.mxu0 %v60
  %968 = vmatprep.subr.bf16.mxu0 0
  %969 = vmatpush1.bf16.msra.mxu0 0
  %970 = vmatprep.subr.bf16.mxu0 0
  %971 = vmatpush1.bf16.msra.mxu0 0
  %972 = vmatprep.subr.bf16.mxu0 0
  %973 = vmatpush1.bf16.msra.mxu0 0
  %974 = vmatprep.subr.bf16.mxu0 0
  %975 = vmatpush1.bf16.msra.mxu0 0
  %976 = vmatprep.subr.bf16.mxu0 0
  %977 = vmatpush1.bf16.msra.mxu0 0
  %978 = vmatprep.subr.bf16.mxu0 0
  %979 = vmatpush1.bf16.msra.mxu0 0
  %980 = vmatprep.subr.bf16.mxu0 0
  %981 = vmatpush1.bf16.msra.mxu0 0
  %982 = vmatprep.subr.bf16.mxu0 0
  %983 = vmatpush1.bf16.msra.mxu0 0
  %984 = vmatprep.subr.bf16.mxu0 0
  %985 = vmatpush1.bf16.msra.mxu0 0
  %986 = vmatprep.subr.bf16.mxu0 0
  %987 = vmatpush1.bf16.msra.mxu0 0
  %988 = vmatprep.subr.bf16.mxu0 0
  %989 = vmatpush1.bf16.msra.mxu0 0
  %990 = vmatprep.subr.bf16.mxu0 0
  %991 = vmatpush1.bf16.msra.mxu0 0
  %992 = vmatprep.subr.bf16.mxu0 0
  %993 = vmatpush1.bf16.msra.mxu0 0
  %994 = vmatprep.subr.bf16.mxu0 0
  %995 = vmatpush1.bf16.msra.mxu0 0
  %996 = vmatprep.mubr.bf16.mxu0 0
  %997 = vmatmul.mubr.bf16.gmra.mrb[0].mxu0 %v962
  %v998 = vpop.f32.mrb[0].mxu0
  %v999 = vadd.f32 0.0, %v998
  %v1000 = vpop.f32.mrb[0].mxu0
  %v1001 = vpop.f32.mrb[0].mxu0
  %v1002 = vpop.f32.mrb[0].mxu0
  %1003 = vdwg.mxu0
  %v1004 = vadd.f32 %v956, %v999
  %v1005 = vmul.f32 %v29, %v1004
  %v1006 = vtanh.pop %v1005
  %v1007 = vmul.f32 %v29, %v1006
  %v1008 = vadd.f32 %v1007, %v30
  %v1009 = vmul.f32 %v1008, %v937
  %1011 = vrot.lane.b32.xlu0 %v1008, 64
  %v1012 = vpop.permute.xlu0 %1011
  %v1014 = vmul.f32 %v1008, %v1012
  %1016 = vrot.lane.b32.xlu0 %v1014, 32
  %v1017 = vpop.permute.xlu0 %1016
  %v1019 = vadd.f32 %v1009, %v1017
  %v1020 = vtanh.pop %v1019
  %1022 = vrot.lane.b32.xlu0 %v1020, 64
  %v1023 = vpop.permute.xlu0 %1022
  %v1025 = vmul.f32 %v1008, %v1023
  %1026 = vst.msk [vmem:[%s4 + $0x10] sm:$0xff] %vm377, %v1025
  %v1027 = vld [vmem:[%s0] sm:$0xff]
  %1029 = vset.pattern.permute.xlu0 12
  %1030 = vperm.xlu0 %1029, %v1027
  %v1031 = vpop.permute.xlu0 %1030
  %v1033 = vmul.f32 %v1031, %v41
  %v1034 = vadd.f32 %v1033, %v48
  %v1035 = vpack.c.bf16 %v1025, %v1025
  %1037 = vrot.lane.b32.xlu0 %v1035, 32
  %v1038 = vpop.permute.xlu0 %1037
  %v1040 = vsel %vm63, %v1038, 0
  %1042 = vmatprep.subr.bf16.mxu0 0
  %1043 = vmatpush1.bf16.msra.mxu0 %v59
  %1044 = vmatprep.subr.bf16.mxu0 0
  %1045 = vmatpush1.bf16.msra.mxu0 %v60
  %1046 = vmatprep.subr.bf16.mxu0 0
  %1047 = vmatpush1.bf16.msra.mxu0 0
  %1048 = vmatprep.subr.bf16.mxu0 0
  %1049 = vmatpush1.bf16.msra.mxu0 0
  %1050 = vmatprep.subr.bf16.mxu0 0
  %1051 = vmatpush1.bf16.msra.mxu0 0
  %1052 = vmatprep.subr.bf16.mxu0 0
  %1053 = vmatpush1.bf16.msra.mxu0 0
  %1054 = vmatprep.subr.bf16.mxu0 0
  %1055 = vmatpush1.bf16.msra.mxu0 0
  %1056 = vmatprep.subr.bf16.mxu0 0
  %1057 = vmatpush1.bf16.msra.mxu0 0
  %1058 = vmatprep.subr.bf16.mxu0 0
  %1059 = vmatpush1.bf16.msra.mxu0 0
  %1060 = vmatprep.subr.bf16.mxu0 0
  %1061 = vmatpush1.bf16.msra.mxu0 0
  %1062 = vmatprep.subr.bf16.mxu0 0
  %1063 = vmatpush1.bf16.msra.mxu0 0
  %1064 = vmatprep.subr.bf16.mxu0 0
  %1065 = vmatpush1.bf16.msra.mxu0 0
  %1066 = vmatprep.subr.bf16.mxu0 0
  %1067 = vmatpush1.bf16.msra.mxu0 0
  %1068 = vmatprep.subr.bf16.mxu0 0
  %1069 = vmatpush1.bf16.msra.mxu0 0
  %1070 = vmatprep.subr.bf16.mxu0 0
  %1071 = vmatpush1.bf16.msra.mxu0 0
  %1072 = vmatprep.subr.bf16.mxu0 0
  %1073 = vmatpush1.bf16.msra.mxu0 0
  %1074 = vmatprep.mubr.bf16.mxu0 0
  %1075 = vmatmul.mubr.bf16.gmra.mrb[0].mxu0 %v1040
  %v1076 = vpop.f32.mrb[0].mxu0
  %v1077 = vadd.f32 0.0, %v1076
  %v1078 = vpop.f32.mrb[0].mxu0
  %v1079 = vpop.f32.mrb[0].mxu0
  %v1080 = vpop.f32.mrb[0].mxu0
  %1081 = vdwg.mxu0
  %v1082 = vadd.f32 %v1034, %v1077
  %v1083 = vmul.f32 %v29, %v1082
  %v1084 = vtanh.pop %v1083
  %v1085 = vmul.f32 %v29, %v1084
  %v1086 = vadd.f32 %v1085, %v30
  %v1087 = vmul.f32 %v1086, %v1019
  %1089 = vrot.lane.b32.xlu0 %v1086, 64
  %v1090 = vpop.permute.xlu0 %1089
  %v1092 = vmul.f32 %v1086, %v1090
  %1094 = vrot.lane.b32.xlu0 %v1092, 32
  %v1095 = vpop.permute.xlu0 %1094
  %v1097 = vadd.f32 %v1087, %v1095
  %v1098 = vtanh.pop %v1097
  %1100 = vrot.lane.b32.xlu0 %v1098, 64
  %v1101 = vpop.permute.xlu0 %1100
  %v1103 = vmul.f32 %v1086, %v1101
  %1105 = vrot.lane.b32.xlu0 %v1103, 32
  %v1106 = vpop.permute.xlu0 %1105
  %1108 = vst.msk [vmem:[%s4 + $0x18] sm:$0xff] %vm63, %v1106
  %v1109 = vld [vmem:[%s0] sm:$0xff]
  %1111 = vset.pattern.permute.xlu0 13
  %1112 = vperm.xlu0 %1111, %v1109
  %v1113 = vpop.permute.xlu0 %1112
  %v1115 = vmul.f32 %v1113, %v41
  %v1116 = vadd.f32 %v1115, %v48
  %v1117 = vpack.c.bf16 %v1103, %v1103
  %1119 = vrot.lane.b32.xlu0 %v1117, 32
  %v1120 = vpop.permute.xlu0 %1119
  %v1122 = vsel %vm63, %v1120, 0
  %1124 = vmatprep.subr.bf16.mxu0 0
  %1125 = vmatpush1.bf16.msra.mxu0 %v59
  %1126 = vmatprep.subr.bf16.mxu0 0
  %1127 = vmatpush1.bf16.msra.mxu0 %v60
  %1128 = vmatprep.subr.bf16.mxu0 0
  %1129 = vmatpush1.bf16.msra.mxu0 0
  %1130 = vmatprep.subr.bf16.mxu0 0
  %1131 = vmatpush1.bf16.msra.mxu0 0
  %1132 = vmatprep.subr.bf16.mxu0 0
  %1133 = vmatpush1.bf16.msra.mxu0 0
  %1134 = vmatprep.subr.bf16.mxu0 0
  %1135 = vmatpush1.bf16.msra.mxu0 0
  %1136 = vmatprep.subr.bf16.mxu0 0
  %1137 = vmatpush1.bf16.msra.mxu0 0
  %1138 = vmatprep.subr.bf16.mxu0 0
  %1139 = vmatpush1.bf16.msra.mxu0 0
  %1140 = vmatprep.subr.bf16.mxu0 0
  %1141 = vmatpush1.bf16.msra.mxu0 0
  %1142 = vmatprep.subr.bf16.mxu0 0
  %1143 = vmatpush1.bf16.msra.mxu0 0
  %1144 = vmatprep.subr.bf16.mxu0 0
  %1145 = vmatpush1.bf16.msra.mxu0 0
  %1146 = vmatprep.subr.bf16.mxu0 0
  %1147 = vmatpush1.bf16.msra.mxu0 0
  %1148 = vmatprep.subr.bf16.mxu0 0
  %1149 = vmatpush1.bf16.msra.mxu0 0
  %1150 = vmatprep.subr.bf16.mxu0 0
  %1151 = vmatpush1.bf16.msra.mxu0 0
  %1152 = vmatprep.subr.bf16.mxu0 0
  %1153 = vmatpush1.bf16.msra.mxu0 0
  %1154 = vmatprep.subr.bf16.mxu0 0
  %1155 = vmatpush1.bf16.msra.mxu0 0
  %1156 = vmatprep.mubr.bf16.mxu0 0
  %1157 = vmatmul.mubr.bf16.gmra.mrb[0].mxu0 %v1122
  %v1158 = vpop.f32.mrb[0].mxu0
  %v1159 = vadd.f32 0.0, %v1158
  %v1160 = vpop.f32.mrb[0].mxu0
  %v1161 = vpop.f32.mrb[0].mxu0
  %v1162 = vpop.f32.mrb[0].mxu0
  %1163 = vdwg.mxu0
  %v1164 = vadd.f32 %v1116, %v1159
  %v1165 = vmul.f32 %v29, %v1164
  %v1166 = vtanh.pop %v1165
  %v1167 = vmul.f32 %v29, %v1166
  %v1168 = vadd.f32 %v1167, %v30
  %v1169 = vmul.f32 %v1168, %v1097
  %1171 = vrot.lane.b32.xlu0 %v1168, 64
  %v1172 = vpop.permute.xlu0 %1171
  %v1174 = vmul.f32 %v1168, %v1172
  %1176 = vrot.lane.b32.xlu0 %v1174, 32
  %v1177 = vpop.permute.xlu0 %1176
  %v1179 = vadd.f32 %v1169, %v1177
  %v1180 = vtanh.pop %v1179
  %1182 = vrot.lane.b32.xlu0 %v1180, 64
  %v1183 = vpop.permute.xlu0 %1182
  %v1185 = vmul.f32 %v1168, %v1183
  %1187 = vrot.lane.b32.xlu0 %v1185, 64
  %v1188 = vpop.permute.xlu0 %1187
  %1190 = vst.msk [vmem:[%s4 + $0x18] sm:$0xff] %vm215, %v1188
  %v1191 = vld [vmem:[%s0] sm:$0xff]
  %1193 = vset.pattern.permute.xlu0 14
  %1194 = vperm.xlu0 %1193, %v1191
  %v1195 = vpop.permute.xlu0 %1194
  %v1197 = vmul.f32 %v1195, %v41
  %v1198 = vadd.f32 %v1197, %v48
  %v1199 = vpack.c.bf16 %v1185, %v1185
  %1201 = vrot.lane.b32.xlu0 %v1199, 32
  %v1202 = vpop.permute.xlu0 %1201
  %v1204 = vsel %vm63, %v1202, 0
  %1206 = vmatprep.subr.bf16.mxu0 0
  %1207 = vmatpush1.bf16.msra.mxu0 %v59
  %1208 = vmatprep.subr.bf16.mxu0 0
  %1209 = vmatpush1.bf16.msra.mxu0 %v60
  %1210 = vmatprep.subr.bf16.mxu0 0
  %1211 = vmatpush1.bf16.msra.mxu0 0
  %1212 = vmatprep.subr.bf16.mxu0 0
  %1213 = vmatpush1.bf16.msra.mxu0 0
  %1214 = vmatprep.subr.bf16.mxu0 0
  %1215 = vmatpush1.bf16.msra.mxu0 0
  %1216 = vmatprep.subr.bf16.mxu0 0
  %1217 = vmatpush1.bf16.msra.mxu0 0
  %1218 = vmatprep.subr.bf16.mxu0 0
  %1219 = vmatpush1.bf16.msra.mxu0 0
  %1220 = vmatprep.subr.bf16.mxu0 0
  %1221 = vmatpush1.bf16.msra.mxu0 0
  %1222 = vmatprep.subr.bf16.mxu0 0
  %1223 = vmatpush1.bf16.msra.mxu0 0
  %1224 = vmatprep.subr.bf16.mxu0 0
  %1225 = vmatpush1.bf16.msra.mxu0 0
  %1226 = vmatprep.subr.bf16.mxu0 0
  %1227 = vmatpush1.bf16.msra.mxu0 0
  %1228 = vmatprep.subr.bf16.mxu0 0
  %1229 = vmatpush1.bf16.msra.mxu0 0
  %1230 = vmatprep.subr.bf16.mxu0 0
  %1231 = vmatpush1.bf16.msra.mxu0 0
  %1232 = vmatprep.subr.bf16.mxu0 0
  %1233 = vmatpush1.bf16.msra.mxu0 0
  %1234 = vmatprep.subr.bf16.mxu0 0
  %1235 = vmatpush1.bf16.msra.mxu0 0
  %1236 = vmatprep.subr.bf16.mxu0 0
  %1237 = vmatpush1.bf16.msra.mxu0 0
  %1238 = vmatprep.mubr.bf16.mxu0 0
  %1239 = vmatmul.mubr.bf16.gmra.mrb[0].mxu0 %v1204
  %v1240 = vpop.f32.mrb[0].mxu0
  %v1241 = vadd.f32 0.0, %v1240
  %v1242 = vpop.f32.mrb[0].mxu0
  %v1243 = vpop.f32.mrb[0].mxu0
  %v1244 = vpop.f32.mrb[0].mxu0
  %1245 = vdwg.mxu0
  %v1246 = vadd.f32 %v1198, %v1241
  %v1247 = vmul.f32 %v29, %v1246
  %v1248 = vtanh.pop %v1247
  %v1249 = vmul.f32 %v29, %v1248
  %v1250 = vadd.f32 %v1249, %v30
  %v1251 = vmul.f32 %v1250, %v1179
  %1253 = vrot.lane.b32.xlu0 %v1250, 64
  %v1254 = vpop.permute.xlu0 %1253
  %v1256 = vmul.f32 %v1250, %v1254
  %1258 = vrot.lane.b32.xlu0 %v1256, 32
  %v1259 = vpop.permute.xlu0 %1258
  %v1261 = vadd.f32 %v1251, %v1259
  %v1262 = vtanh.pop %v1261
  %1264 = vrot.lane.b32.xlu0 %v1262, 64
  %v1265 = vpop.permute.xlu0 %1264
  %v1267 = vmul.f32 %v1250, %v1265
  %1269 = vrot.lane.b32.xlu0 %v1267, 96
  %v1270 = vpop.permute.xlu0 %1269
  %1272 = vst.msk [vmem:[%s4 + $0x18] sm:$0xff] %vm298, %v1270
  %v1273 = vld [vmem:[%s0] sm:$0xff]
  %1275 = vset.pattern.permute.xlu0 15
  %1276 = vperm.xlu0 %1275, %v1273
  %v1277 = vpop.permute.xlu0 %1276
  %v1279 = vmul.f32 %v1277, %v41
  %v1280 = vadd.f32 %v1279, %v48
  %v1281 = vpack.c.bf16 %v1267, %v1267
  %1283 = vrot.lane.b32.xlu0 %v1281, 32
  %v1284 = vpop.permute.xlu0 %1283
  %v1286 = vsel %vm63, %v1284, 0
  %1288 = vmatprep.subr.bf16.mxu0 0
  %1289 = vmatpush1.bf16.msra.mxu0 %v59
  %1290 = vmatprep.subr.bf16.mxu0 0
  %1291 = vmatpush1.bf16.msra.mxu0 %v60
  %1292 = vmatprep.subr.bf16.mxu0 0
  %1293 = vmatpush1.bf16.msra.mxu0 0
  %1294 = vmatprep.subr.bf16.mxu0 0
  %1295 = vmatpush1.bf16.msra.mxu0 0
  %1296 = vmatprep.subr.bf16.mxu0 0
  %1297 = vmatpush1.bf16.msra.mxu0 0
  %1298 = vmatprep.subr.bf16.mxu0 0
  %1299 = vmatpush1.bf16.msra.mxu0 0
  %1300 = vmatprep.subr.bf16.mxu0 0
  %1301 = vmatpush1.bf16.msra.mxu0 0
  %1302 = vmatprep.subr.bf16.mxu0 0
  %1303 = vmatpush1.bf16.msra.mxu0 0
  %1304 = vmatprep.subr.bf16.mxu0 0
  %1305 = vmatpush1.bf16.msra.mxu0 0
  %1306 = vmatprep.subr.bf16.mxu0 0
  %1307 = vmatpush1.bf16.msra.mxu0 0
  %1308 = vmatprep.subr.bf16.mxu0 0
  %1309 = vmatpush1.bf16.msra.mxu0 0
  %1310 = vmatprep.subr.bf16.mxu0 0
  %1311 = vmatpush1.bf16.msra.mxu0 0
  %1312 = vmatprep.subr.bf16.mxu0 0
  %1313 = vmatpush1.bf16.msra.mxu0 0
  %1314 = vmatprep.subr.bf16.mxu0 0
  %1315 = vmatpush1.bf16.msra.mxu0 0
  %1316 = vmatprep.subr.bf16.mxu0 0
  %1317 = vmatpush1.bf16.msra.mxu0 0
  %1318 = vmatprep.subr.bf16.mxu0 0
  %1319 = vmatpush1.bf16.msra.mxu0 0
  %1320 = vmatprep.mubr.bf16.mxu0 0
  %1321 = vmatmul.mubr.bf16.gmra.mrb[0].mxu0 %v1286
  %v1322 = vpop.f32.mrb[0].mxu0
  %v1323 = vadd.f32 0.0, %v1322
  %v1324 = vpop.f32.mrb[0].mxu0
  %v1325 = vpop.f32.mrb[0].mxu0
  %v1326 = vpop.f32.mrb[0].mxu0
  %1327 = vdwg.mxu0
  %v1328 = vadd.f32 %v1280, %v1323
  %v1329 = vmul.f32 %v29, %v1328
  %v1330 = vtanh.pop %v1329
  %v1331 = vmul.f32 %v29, %v1330
  %v1332 = vadd.f32 %v1331, %v30
  %v1333 = vmul.f32 %v1332, %v1261
  %1335 = vrot.lane.b32.xlu0 %v1332, 64
  %v1336 = vpop.permute.xlu0 %1335
  %v1338 = vmul.f32 %v1332, %v1336
  %1340 = vrot.lane.b32.xlu0 %v1338, 32
  %v1341 = vpop.permute.xlu0 %1340
  %v1343 = vadd.f32 %v1333, %v1341
  %v1344 = vtanh.pop %v1343
  %1346 = vrot.lane.b32.xlu0 %v1344, 64
  %v1347 = vpop.permute.xlu0 %1346
  %v1349 = vmul.f32 %v1332, %v1347
  %1350 = vst.msk [vmem:[%s4 + $0x18] sm:$0xff] %vm377, %v1349
  // Predicated region
  $region18: #{mdlstm_forward.1} parent=0 // pred_check
    _
  $region19: #{mdlstm_forward.1} parent=0 // pred_check_branch
    %1352 = sbr.rel (0) target = $region21
  $region20: #{mdlstm_forward.1} parent=0 // pred_region
    _
  $region21: #{mdlstm_forward.1} parent=0 // pred_fallthru
    _
  // Predicated region
  $region22: #{mdlstm_forward.1} parent=0 // pred_check
    _
  $region23: #{mdlstm_forward.1} parent=0 // pred_check_branch
    %1354 = sbr.rel (0) target = $region25
  $region24: #{mdlstm_forward.1} parent=0 // pred_region
    _
  $region25: #{mdlstm_forward.1} parent=0 // pred_fallthru
    _

</llo_original>
